<compile_context>
chip_gen: v7x
topology: tpu7x:2x2x1
jax: 0.10.0
libtpu: 0.0.40
codegen_flags: <defaults>
</compile_context>

<pallas_src>
import jax
import jax.numpy as jnp
from jax import lax
from jax.experimental import pallas as pl
from jax.experimental.pallas import tpu as pltpu


def gru_kernel(ids_ref,    # (T*B, 1) int32  token ids, time-major, flattened
               emb_ref,    # (V, E)   f32    embedding table (pad row zeroed)
               wi_ref,     # (E, 3H)  bf16   fused [r|z|n] input weights (pre-transposed)
               wh_ref,     # (H, 3H)  bf16   fused [r|z|n] hidden weights (pre-transposed)
               bi_ref,     # (1, 3H)  f32    [b_ir+b_hr | b_iz+b_hz | b_in]
               bhn_ref,    # (1, H)   f32    b_hn (must stay inside the r-gated term)
               fcw_ref,    # (H, 128) f32    fc weight, zero-padded to 128 lanes
               fcb_ref,    # (1, 128) f32    fc bias,   zero-padded to 128 lanes
               out_ref,    # (B, 128) f32    output: padded logits (lane-dense)
               xproj_ref): # VMEM scratch (T*B, 3H) f32: precomputed input projections
    TB = ids_ref.shape[0]
    V, _E = emb_ref.shape
    H = wh_ref.shape[0]
    B = out_ref.shape[0]
    T = TB // B

    # ---------- prologue (independent of h -> off the serial recurrence path) ----------
    # Embedding gather as a one-hot MXU matmul: exact row selection, handles pad row=0.
    ids = ids_ref[...]                                                     # (TB, 1)
    onehot = (ids == lax.broadcasted_iota(jnp.int32, (TB, V), 1)).astype(jnp.bfloat16)
    x = jnp.dot(onehot, emb_ref[...].astype(jnp.bfloat16),
                preferred_element_type=jnp.float32)                        # (TB, E)
    # All x-side projections + fused biases in one big bf16 MXU matmul.
    xproj_ref[...] = (
        jnp.dot(x.astype(jnp.bfloat16), wi_ref[...],
                preferred_element_type=jnp.float32)
        + bi_ref[...])                                                     # (TB, 3H)

    # Hoist the (1,H)->(B,H) broadcast out of the loop (JAX does not CSE broadcasts).
    bhn = jnp.broadcast_to(bhn_ref[...], (B, H))
    wh = wh_ref[...]                                                       # (H, 3H) bf16

    # PyTorch nn.GRU gate equations (gate order r, z, n):
    #   r  = sigmoid(x W_ir^T + b_ir + h W_hr^T + b_hr)
    #   z  = sigmoid(x W_iz^T + b_iz + h W_hz^T + b_hz)
    #   n  = tanh   (x W_in^T + b_in + r * (h W_hn^T + b_hn))
    #   h' = (1 - z) * n + z * h

    # ---------- peeled t = 0 : h0 == 0, skip the h @ W_h matmul entirely ----------
    gx = xproj_ref[pl.ds(0, B), :]                                         # (B, 3H)
    rz = jax.nn.sigmoid(gx[:, :2 * H])        # one EUP pass over the contiguous r|z slab
    z = rz[:, H:]
    n = jnp.tanh(gx[:, 2 * H:] + rz[:, :H] * bhn)
    h = n - z * n                                                          # (1-z)*n + z*0

    # ---------- serial recurrence: T static -> fully unrolled, h stays in vregs ----------
    for t in range(1, T):
        gx = xproj_ref[pl.ds(t * B, B), :]                                 # (B, 3H)
        gh = jnp.dot(h.astype(jnp.bfloat16), wh,
                     preferred_element_type=jnp.float32)                   # (B, 3H)
        rz = jax.nn.sigmoid(gx[:, :2 * H] + gh[:, :2 * H])                 # r|z together
        r = rz[:, :H]
        z = rz[:, H:]
        n = jnp.tanh(gx[:, 2 * H:] + r * (gh[:, 2 * H:] + bhn))
        h = n + z * (h - n)                                                # == (1-z)n + zh

    # ---------- epilogue: dropout(eval)=identity, fc on a lane-dense 128-wide output ----
    out_ref[...] = (jnp.dot(h, fcw_ref[...], preferred_element_type=jnp.float32)
                    + fcb_ref[...])


def gru_model_forward(token_ids, params):
    """token_ids: (B, T) int32.  Returns logits (B, output_dim)."""
    B, T = token_ids.shape
    H = params["w_h"].shape[0]
    O = params["fc_w"].shape[1]
    O_pad = params["fc_w_pad"].shape[1]

    # Only int32 glue outside the kernel: transpose the tiny (B,T) id matrix to
    # time-major and flatten (256 bytes), everything else happens inside one pallas_call.
    ids_tm = token_ids.T.reshape(T * B, 1)

    out_pad = pl.pallas_call(
        gru_kernel,
        out_shape=jax.ShapeDtypeStruct((B, O_pad), jnp.float32),
        scratch_shapes=[pltpu.VMEM((T * B, 3 * H), jnp.float32)],
    )(ids_tm, params["embedding"], params["w_i"], params["w_h"],
      params["b_i"], params["b_hn"], params["fc_w_pad"], params["fc_b_pad"])

    return out_pad[:, :O]


def init_params(key, vocab_size, embedding_dim, hidden_dim, output_dim, pad_idx):
    ks = jax.random.split(key, 15)
    E, H, O, V = embedding_dim, hidden_dim, output_dim, vocab_size
    bound = float(1.0 / (H ** 0.5))
    u = lambda k, shape: jax.random.uniform(k, shape, jnp.float32, -bound, bound)

    emb = jax.random.normal(ks[0], (V, E), jnp.float32)
    emb = emb.at[pad_idx].set(0.0)                       # padding_idx row is zero

    # PyTorch stores weight_ih_l0 (3H, E) / weight_hh_l0 (3H, H) in [r, z, n] order;
    # here each gate is drawn independently, pre-transposed for x @ W, fused, and the
    # fused weight matrices are stored in bf16 (MXU dtype); all biases stay f32.
    w_ir, w_iz, w_in = u(ks[1], (E, H)), u(ks[2], (E, H)), u(ks[3], (E, H))
    w_hr, w_hz, w_hn = u(ks[4], (H, H)), u(ks[5], (H, H)), u(ks[6], (H, H))
    b_ir, b_iz, b_in = u(ks[7], (1, H)), u(ks[8], (1, H)), u(ks[9], (1, H))
    b_hr, b_hz, b_hn = u(ks[10], (1, H)), u(ks[11], (1, H)), u(ks[12], (1, H))
    fc_w = u(ks[13], (H, O))
    fc_b = u(ks[14], (1, O))

    # fc padded to 128 lanes so the kernel's output store stays unmasked / lane-dense.
    fc_w_pad = jnp.zeros((H, 128), jnp.float32).at[:, :O].set(fc_w)
    fc_b_pad = jnp.zeros((1, 128), jnp.float32).at[:, :O].set(fc_b)

    return {
        "embedding": emb,
        "w_i": jnp.concatenate([w_ir, w_iz, w_in], axis=1).astype(jnp.bfloat16),  # (E,3H)
        "w_h": jnp.concatenate([w_hr, w_hz, w_hn], axis=1).astype(jnp.bfloat16),  # (H,3H)
        "b_i": jnp.concatenate([b_ir + b_hr, b_iz + b_hz, b_in], axis=1),          # (1,3H)
        "b_hn": b_hn,                                                              # (1,H)
        "fc_w": fc_w, "fc_b": fc_b,
        "fc_w_pad": fc_w_pad, "fc_b_pad": fc_b_pad,
    }


def gru_model_reference(token_ids, params):
    """Pure-JAX f32 reference (lax.scan) for verification."""
    w_i = params["w_i"].astype(jnp.float32)
    w_h = params["w_h"].astype(jnp.float32)
    x = jnp.take(params["embedding"], token_ids, axis=0)       # (B, T, E)
    B = x.shape[0]
    H = w_h.shape[0]

    def step(h, x_t):
        gx = x_t @ w_i + params["b_i"]
        gh = h @ w_h
        r = jax.nn.sigmoid(gx[:, :H] + gh[:, :H])
        z = jax.nn.sigmoid(gx[:, H:2 * H] + gh[:, H:2 * H])
        n = jnp.tanh(gx[:, 2 * H:] + r * (gh[:, 2 * H:] + params["b_hn"]))
        return (1.0 - z) * n + z * h, None

    h0 = jnp.zeros((B, H), jnp.float32)
    hT, _ = lax.scan(step, h0, jnp.transpose(x, (1, 0, 2)))
    return hT @ params["fc_w"] + params["fc_b"]


if __name__ == "__main__":
    # Small shapes consistent with the module's forward:
    vocab_size, embedding_dim, hidden_dim, output_dim = 100, 64, 128, 2
    batch, seq_len, pad_idx = 8, 8, 0

    key = jax.random.PRNGKey(0)
    k_par, k_tok = jax.random.split(key)
    params = init_params(k_par, vocab_size, embedding_dim, hidden_dim, output_dim, pad_idx)
    token_ids = jax.random.randint(k_tok, (batch, seq_len), 0, vocab_size, dtype=jnp.int32)

    # TODO(synk): nn.Dropout is stochastic in train mode; eval-mode (identity) semantics implemented.
    logits = jax.jit(gru_model_forward)(token_ids, params)
    logits = jax.block_until_ready(logits)

    ref = jax.block_until_ready(gru_model_reference(token_ids, params))
    assert logits.shape == (batch, output_dim)
    # bf16 MXU operands (shared rounded weights with the reference) -> slightly relaxed tol.
    assert jnp.allclose(logits, ref, atol=2e-2, rtol=2e-2), (
        f"mismatch: max abs err {jnp.max(jnp.abs(logits - ref))}")

    print("KERNEL_OK")
</pallas_src>

<mosaic_0001>
module attributes {stable_mosaic.version = 11 : i64} {
  func.func @gru_kernel(%arg0: memref<64x1xi32, #tpu.memory_space<vmem>>, %arg1: memref<100x64xf32, #tpu.memory_space<vmem>>, %arg2: memref<64x384xbf16, #tpu.memory_space<vmem>>, %arg3: memref<128x384xbf16, #tpu.memory_space<vmem>>, %arg4: memref<1x384xf32, #tpu.memory_space<vmem>>, %arg5: memref<1x128xf32, #tpu.memory_space<vmem>>, %arg6: memref<128x128xf32, #tpu.memory_space<vmem>>, %arg7: memref<1x128xf32, #tpu.memory_space<vmem>>, %arg8: memref<8x128xf32, #tpu.memory_space<vmem>>, %arg9: memref<64x384xf32, #tpu.memory_space<vmem>>) attributes {dimension_semantics = [], scalar_prefetch = 0 : i64, scratch_operands = 1 : i64, tpu.core_type = #tpu.core_type<tc>} {
    %c0 = arith.constant 0 : index
    %c0_0 = arith.constant 0 : index
    %0 = vector.load %arg0[%c0, %c0_0] : memref<64x1xi32, #tpu.memory_space<vmem>>, vector<64x1xi32>
    %1 = tpu.iota {dimensions = array<i32: 1>} : vector<64x100xi32>
    %2 = vector.broadcast %0 : vector<64x1xi32> to vector<64x100xi32>
    %3 = arith.cmpi eq, %2, %1 : vector<64x100xi32>
    %4 = arith.extui %3 : vector<64x100xi1> to vector<64x100xi32>
    %5 = arith.sitofp %4 : vector<64x100xi32> to vector<64x100xf32>
    %6 = arith.truncf %5 : vector<64x100xf32> to vector<64x100xbf16>
    %c0_1 = arith.constant 0 : index
    %c0_2 = arith.constant 0 : index
    %7 = vector.load %arg1[%c0_1, %c0_2] : memref<100x64xf32, #tpu.memory_space<vmem>>, vector<100x64xf32>
    %8 = arith.truncf %7 : vector<100x64xf32> to vector<100x64xbf16>
    %cst = arith.constant dense<0.000000e+00> : vector<64x64xf32>
    %9 = tpu.matmul %6, %8, %cst {dimension_numbers = #tpu.dot_dimension_numbers<[1], [0], [0], [1], [0, 0, 1, 1], [], []>} : vector<64x100xbf16>, vector<100x64xbf16>, vector<64x64xf32> -> vector<64x64xf32>
    %10 = arith.truncf %9 : vector<64x64xf32> to vector<64x64xbf16>
    %c0_3 = arith.constant 0 : index
    %c0_4 = arith.constant 0 : index
    %11 = vector.load %arg2[%c0_3, %c0_4] : memref<64x384xbf16, #tpu.memory_space<vmem>>, vector<64x384xbf16>
    %cst_5 = arith.constant dense<0.000000e+00> : vector<64x384xf32>
    %12 = tpu.matmul %10, %11, %cst_5 {dimension_numbers = #tpu.dot_dimension_numbers<[1], [0], [0], [1], [0, 0, 1, 1], [], []>} : vector<64x64xbf16>, vector<64x384xbf16>, vector<64x384xf32> -> vector<64x384xf32>
    %c0_6 = arith.constant 0 : index
    %c0_7 = arith.constant 0 : index
    %13 = vector.load %arg4[%c0_6, %c0_7] : memref<1x384xf32, #tpu.memory_space<vmem>>, vector<1x384xf32>
    %14 = vector.broadcast %13 : vector<1x384xf32> to vector<64x384xf32>
    %15 = arith.addf %12, %14 : vector<64x384xf32>
    %c0_8 = arith.constant 0 : index
    %c0_9 = arith.constant 0 : index
    %16 = vector.load %arg9[%c0_8, %c0_9] : memref<64x384xf32, #tpu.memory_space<vmem>>, vector<64x384xf32>
    tpu.vector_store %arg9[%c0_8, %c0_9], %15 {strides = array<i32>} : memref<64x384xf32, #tpu.memory_space<vmem>>, vector<64x384xf32>,
    %c0_10 = arith.constant 0 : index
    %c0_11 = arith.constant 0 : index
    %17 = vector.load %arg5[%c0_10, %c0_11] : memref<1x128xf32, #tpu.memory_space<vmem>>, vector<1x128xf32>
    %18 = vector.shape_cast %17 : vector<1x128xf32> to vector<1x128xf32>
    %19 = vector.broadcast %18 : vector<1x128xf32> to vector<8x128xf32>
    %c0_12 = arith.constant 0 : index
    %c0_13 = arith.constant 0 : index
    %20 = vector.load %arg3[%c0_12, %c0_13] : memref<128x384xbf16, #tpu.memory_space<vmem>>, vector<128x384xbf16>
    %c0_14 = arith.constant 0 : index
    %c0_15 = arith.constant 0 : index
    %21 = vector.load %arg9[%c0_14, %c0_15] : memref<64x384xf32, #tpu.memory_space<vmem>>, vector<8x384xf32>
    %22 = vector.extract_strided_slice %21 {offsets = [0, 0], sizes = [8, 256], strides = [1, 1]} : vector<8x384xf32> to vector<8x256xf32>
    %23 = arith.negf %22 : vector<8x256xf32>
    %24 = math.exp %23 : vector<8x256xf32>
    %cst_16 = arith.constant 1.000000e+00 : f32
    %25 = vector.broadcast %cst_16 : f32 to vector<8x256xf32>
    %26 = arith.addf %25, %24 : vector<8x256xf32>
    %27 = arith.divf %25, %26 : vector<8x256xf32>
    %28 = vector.extract_strided_slice %27 {offsets = [0, 128], sizes = [8, 128], strides = [1, 1]} : vector<8x256xf32> to vector<8x128xf32>
    %29 = vector.extract_strided_slice %21 {offsets = [0, 256], sizes = [8, 128], strides = [1, 1]} : vector<8x384xf32> to vector<8x128xf32>
    %30 = vector.extract_strided_slice %27 {offsets = [0, 0], sizes = [8, 128], strides = [1, 1]} : vector<8x256xf32> to vector<8x128xf32>
    %31 = arith.mulf %30, %19 : vector<8x128xf32>
    %32 = arith.addf %29, %31 : vector<8x128xf32>
    %33 = math.tanh %32 : vector<8x128xf32>
    %34 = arith.mulf %28, %33 : vector<8x128xf32>
    %35 = arith.subf %33, %34 : vector<8x128xf32>
    %c8 = arith.constant 8 : index
    %c0_17 = arith.constant 0 : index
    %36 = vector.load %arg9[%c8, %c0_17] : memref<64x384xf32, #tpu.memory_space<vmem>>, vector<8x384xf32>
    %37 = arith.truncf %35 : vector<8x128xf32> to vector<8x128xbf16>
    %cst_18 = arith.constant dense<0.000000e+00> : vector<8x384xf32>
    %38 = tpu.matmul %37, %20, %cst_18 {dimension_numbers = #tpu.dot_dimension_numbers<[1], [0], [0], [1], [0, 0, 1, 1], [], []>} : vector<8x128xbf16>, vector<128x384xbf16>, vector<8x384xf32> -> vector<8x384xf32>
    %39 = vector.extract_strided_slice %36 {offsets = [0, 0], sizes = [8, 256], strides = [1, 1]} : vector<8x384xf32> to vector<8x256xf32>
    %40 = vector.extract_strided_slice %38 {offsets = [0, 0], sizes = [8, 256], strides = [1, 1]} : vector<8x384xf32> to vector<8x256xf32>
    %41 = arith.addf %39, %40 : vector<8x256xf32>
    %42 = arith.negf %41 : vector<8x256xf32>
    %43 = math.exp %42 : vector<8x256xf32>
    %cst_19 = arith.constant 1.000000e+00 : f32
    %44 = vector.broadcast %cst_19 : f32 to vector<8x256xf32>
    %45 = arith.addf %44, %43 : vector<8x256xf32>
    %46 = arith.divf %44, %45 : vector<8x256xf32>
    %47 = vector.extract_strided_slice %46 {offsets = [0, 0], sizes = [8, 128], strides = [1, 1]} : vector<8x256xf32> to vector<8x128xf32>
    %48 = vector.extract_strided_slice %46 {offsets = [0, 128], sizes = [8, 128], strides = [1, 1]} : vector<8x256xf32> to vector<8x128xf32>
    %49 = vector.extract_strided_slice %36 {offsets = [0, 256], sizes = [8, 128], strides = [1, 1]} : vector<8x384xf32> to vector<8x128xf32>
    %50 = vector.extract_strided_slice %38 {offsets = [0, 256], sizes = [8, 128], strides = [1, 1]} : vector<8x384xf32> to vector<8x128xf32>
    %51 = arith.addf %50, %19 : vector<8x128xf32>
    %52 = arith.mulf %47, %51 : vector<8x128xf32>
    %53 = arith.addf %49, %52 : vector<8x128xf32>
    %54 = math.tanh %53 : vector<8x128xf32>
    %55 = arith.subf %35, %54 : vector<8x128xf32>
    %56 = arith.mulf %48, %55 : vector<8x128xf32>
    %57 = arith.addf %54, %56 : vector<8x128xf32>
    %c16 = arith.constant 16 : index
    %c0_20 = arith.constant 0 : index
    %58 = vector.load %arg9[%c16, %c0_20] : memref<64x384xf32, #tpu.memory_space<vmem>>, vector<8x384xf32>
    %59 = arith.truncf %57 : vector<8x128xf32> to vector<8x128xbf16>
    %cst_21 = arith.constant dense<0.000000e+00> : vector<8x384xf32>
    %60 = tpu.matmul %59, %20, %cst_21 {dimension_numbers = #tpu.dot_dimension_numbers<[1], [0], [0], [1], [0, 0, 1, 1], [], []>} : vector<8x128xbf16>, vector<128x384xbf16>, vector<8x384xf32> -> vector<8x384xf32>
    %61 = vector.extract_strided_slice %58 {offsets = [0, 0], sizes = [8, 256], strides = [1, 1]} : vector<8x384xf32> to vector<8x256xf32>
    %62 = vector.extract_strided_slice %60 {offsets = [0, 0], sizes = [8, 256], strides = [1, 1]} : vector<8x384xf32> to vector<8x256xf32>
    %63 = arith.addf %61, %62 : vector<8x256xf32>
    %64 = arith.negf %63 : vector<8x256xf32>
    %65 = math.exp %64 : vector<8x256xf32>
    %cst_22 = arith.constant 1.000000e+00 : f32
    %66 = vector.broadcast %cst_22 : f32 to vector<8x256xf32>
    %67 = arith.addf %66, %65 : vector<8x256xf32>
    %68 = arith.divf %66, %67 : vector<8x256xf32>
    %69 = vector.extract_strided_slice %68 {offsets = [0, 0], sizes = [8, 128], strides = [1, 1]} : vector<8x256xf32> to vector<8x128xf32>
    %70 = vector.extract_strided_slice %68 {offsets = [0, 128], sizes = [8, 128], strides = [1, 1]} : vector<8x256xf32> to vector<8x128xf32>
    %71 = vector.extract_strided_slice %58 {offsets = [0, 256], sizes = [8, 128], strides = [1, 1]} : vector<8x384xf32> to vector<8x128xf32>
    %72 = vector.extract_strided_slice %60 {offsets = [0, 256], sizes = [8, 128], strides = [1, 1]} : vector<8x384xf32> to vector<8x128xf32>
    %73 = arith.addf %72, %19 : vector<8x128xf32>
    %74 = arith.mulf %69, %73 : vector<8x128xf32>
    %75 = arith.addf %71, %74 : vector<8x128xf32>
    %76 = math.tanh %75 : vector<8x128xf32>
    %77 = arith.subf %57, %76 : vector<8x128xf32>
    %78 = arith.mulf %70, %77 : vector<8x128xf32>
    %79 = arith.addf %76, %78 : vector<8x128xf32>
    %c24 = arith.constant 24 : index
    %c0_23 = arith.constant 0 : index
    %80 = vector.load %arg9[%c24, %c0_23] : memref<64x384xf32, #tpu.memory_space<vmem>>, vector<8x384xf32>
    %81 = arith.truncf %79 : vector<8x128xf32> to vector<8x128xbf16>
    %cst_24 = arith.constant dense<0.000000e+00> : vector<8x384xf32>
    %82 = tpu.matmul %81, %20, %cst_24 {dimension_numbers = #tpu.dot_dimension_numbers<[1], [0], [0], [1], [0, 0, 1, 1], [], []>} : vector<8x128xbf16>, vector<128x384xbf16>, vector<8x384xf32> -> vector<8x384xf32>
    %83 = vector.extract_strided_slice %80 {offsets = [0, 0], sizes = [8, 256], strides = [1, 1]} : vector<8x384xf32> to vector<8x256xf32>
    %84 = vector.extract_strided_slice %82 {offsets = [0, 0], sizes = [8, 256], strides = [1, 1]} : vector<8x384xf32> to vector<8x256xf32>
    %85 = arith.addf %83, %84 : vector<8x256xf32>
    %86 = arith.negf %85 : vector<8x256xf32>
    %87 = math.exp %86 : vector<8x256xf32>
    %cst_25 = arith.constant 1.000000e+00 : f32
    %88 = vector.broadcast %cst_25 : f32 to vector<8x256xf32>
    %89 = arith.addf %88, %87 : vector<8x256xf32>
    %90 = arith.divf %88, %89 : vector<8x256xf32>
    %91 = vector.extract_strided_slice %90 {offsets = [0, 0], sizes = [8, 128], strides = [1, 1]} : vector<8x256xf32> to vector<8x128xf32>
    %92 = vector.extract_strided_slice %90 {offsets = [0, 128], sizes = [8, 128], strides = [1, 1]} : vector<8x256xf32> to vector<8x128xf32>
    %93 = vector.extract_strided_slice %80 {offsets = [0, 256], sizes = [8, 128], strides = [1, 1]} : vector<8x384xf32> to vector<8x128xf32>
    %94 = vector.extract_strided_slice %82 {offsets = [0, 256], sizes = [8, 128], strides = [1, 1]} : vector<8x384xf32> to vector<8x128xf32>
    %95 = arith.addf %94, %19 : vector<8x128xf32>
    %96 = arith.mulf %91, %95 : vector<8x128xf32>
    %97 = arith.addf %93, %96 : vector<8x128xf32>
    %98 = math.tanh %97 : vector<8x128xf32>
    %99 = arith.subf %79, %98 : vector<8x128xf32>
    %100 = arith.mulf %92, %99 : vector<8x128xf32>
    %101 = arith.addf %98, %100 : vector<8x128xf32>
    %c32 = arith.constant 32 : index
    %c0_26 = arith.constant 0 : index
    %102 = vector.load %arg9[%c32, %c0_26] : memref<64x384xf32, #tpu.memory_space<vmem>>, vector<8x384xf32>
    %103 = arith.truncf %101 : vector<8x128xf32> to vector<8x128xbf16>
    %cst_27 = arith.constant dense<0.000000e+00> : vector<8x384xf32>
    %104 = tpu.matmul %103, %20, %cst_27 {dimension_numbers = #tpu.dot_dimension_numbers<[1], [0], [0], [1], [0, 0, 1, 1], [], []>} : vector<8x128xbf16>, vector<128x384xbf16>, vector<8x384xf32> -> vector<8x384xf32>
    %105 = vector.extract_strided_slice %102 {offsets = [0, 0], sizes = [8, 256], strides = [1, 1]} : vector<8x384xf32> to vector<8x256xf32>
    %106 = vector.extract_strided_slice %104 {offsets = [0, 0], sizes = [8, 256], strides = [1, 1]} : vector<8x384xf32> to vector<8x256xf32>
    %107 = arith.addf %105, %106 : vector<8x256xf32>
    %108 = arith.negf %107 : vector<8x256xf32>
    %109 = math.exp %108 : vector<8x256xf32>
    %cst_28 = arith.constant 1.000000e+00 : f32
    %110 = vector.broadcast %cst_28 : f32 to vector<8x256xf32>
    %111 = arith.addf %110, %109 : vector<8x256xf32>
    %112 = arith.divf %110, %111 : vector<8x256xf32>
    %113 = vector.extract_strided_slice %112 {offsets = [0, 0], sizes = [8, 128], strides = [1, 1]} : vector<8x256xf32> to vector<8x128xf32>
    %114 = vector.extract_strided_slice %112 {offsets = [0, 128], sizes = [8, 128], strides = [1, 1]} : vector<8x256xf32> to vector<8x128xf32>
    %115 = vector.extract_strided_slice %102 {offsets = [0, 256], sizes = [8, 128], strides = [1, 1]} : vector<8x384xf32> to vector<8x128xf32>
    %116 = vector.extract_strided_slice %104 {offsets = [0, 256], sizes = [8, 128], strides = [1, 1]} : vector<8x384xf32> to vector<8x128xf32>
    %117 = arith.addf %116, %19 : vector<8x128xf32>
    %118 = arith.mulf %113, %117 : vector<8x128xf32>
    %119 = arith.addf %115, %118 : vector<8x128xf32>
    %120 = math.tanh %119 : vector<8x128xf32>
    %121 = arith.subf %101, %120 : vector<8x128xf32>
    %122 = arith.mulf %114, %121 : vector<8x128xf32>
    %123 = arith.addf %120, %122 : vector<8x128xf32>
    %c40 = arith.constant 40 : index
    %c0_29 = arith.constant 0 : index
    %124 = vector.load %arg9[%c40, %c0_29] : memref<64x384xf32, #tpu.memory_space<vmem>>, vector<8x384xf32>
    %125 = arith.truncf %123 : vector<8x128xf32> to vector<8x128xbf16>
    %cst_30 = arith.constant dense<0.000000e+00> : vector<8x384xf32>
    %126 = tpu.matmul %125, %20, %cst_30 {dimension_numbers = #tpu.dot_dimension_numbers<[1], [0], [0], [1], [0, 0, 1, 1], [], []>} : vector<8x128xbf16>, vector<128x384xbf16>, vector<8x384xf32> -> vector<8x384xf32>
    %127 = vector.extract_strided_slice %124 {offsets = [0, 0], sizes = [8, 256], strides = [1, 1]} : vector<8x384xf32> to vector<8x256xf32>
    %128 = vector.extract_strided_slice %126 {offsets = [0, 0], sizes = [8, 256], strides = [1, 1]} : vector<8x384xf32> to vector<8x256xf32>
    %129 = arith.addf %127, %128 : vector<8x256xf32>
    %130 = arith.negf %129 : vector<8x256xf32>
    %131 = math.exp %130 : vector<8x256xf32>
    %cst_31 = arith.constant 1.000000e+00 : f32
    %132 = vector.broadcast %cst_31 : f32 to vector<8x256xf32>
    %133 = arith.addf %132, %131 : vector<8x256xf32>
    %134 = arith.divf %132, %133 : vector<8x256xf32>
    %135 = vector.extract_strided_slice %134 {offsets = [0, 0], sizes = [8, 128], strides = [1, 1]} : vector<8x256xf32> to vector<8x128xf32>
    %136 = vector.extract_strided_slice %134 {offsets = [0, 128], sizes = [8, 128], strides = [1, 1]} : vector<8x256xf32> to vector<8x128xf32>
    %137 = vector.extract_strided_slice %124 {offsets = [0, 256], sizes = [8, 128], strides = [1, 1]} : vector<8x384xf32> to vector<8x128xf32>
    %138 = vector.extract_strided_slice %126 {offsets = [0, 256], sizes = [8, 128], strides = [1, 1]} : vector<8x384xf32> to vector<8x128xf32>
    %139 = arith.addf %138, %19 : vector<8x128xf32>
    %140 = arith.mulf %135, %139 : vector<8x128xf32>
    %141 = arith.addf %137, %140 : vector<8x128xf32>
    %142 = math.tanh %141 : vector<8x128xf32>
    %143 = arith.subf %123, %142 : vector<8x128xf32>
    %144 = arith.mulf %136, %143 : vector<8x128xf32>
    %145 = arith.addf %142, %144 : vector<8x128xf32>
    %c48 = arith.constant 48 : index
    %c0_32 = arith.constant 0 : index
    %146 = vector.load %arg9[%c48, %c0_32] : memref<64x384xf32, #tpu.memory_space<vmem>>, vector<8x384xf32>
    %147 = arith.truncf %145 : vector<8x128xf32> to vector<8x128xbf16>
    %cst_33 = arith.constant dense<0.000000e+00> : vector<8x384xf32>
    %148 = tpu.matmul %147, %20, %cst_33 {dimension_numbers = #tpu.dot_dimension_numbers<[1], [0], [0], [1], [0, 0, 1, 1], [], []>} : vector<8x128xbf16>, vector<128x384xbf16>, vector<8x384xf32> -> vector<8x384xf32>
    %149 = vector.extract_strided_slice %146 {offsets = [0, 0], sizes = [8, 256], strides = [1, 1]} : vector<8x384xf32> to vector<8x256xf32>
    %150 = vector.extract_strided_slice %148 {offsets = [0, 0], sizes = [8, 256], strides = [1, 1]} : vector<8x384xf32> to vector<8x256xf32>
    %151 = arith.addf %149, %150 : vector<8x256xf32>
    %152 = arith.negf %151 : vector<8x256xf32>
    %153 = math.exp %152 : vector<8x256xf32>
    %cst_34 = arith.constant 1.000000e+00 : f32
    %154 = vector.broadcast %cst_34 : f32 to vector<8x256xf32>
    %155 = arith.addf %154, %153 : vector<8x256xf32>
    %156 = arith.divf %154, %155 : vector<8x256xf32>
    %157 = vector.extract_strided_slice %156 {offsets = [0, 0], sizes = [8, 128], strides = [1, 1]} : vector<8x256xf32> to vector<8x128xf32>
    %158 = vector.extract_strided_slice %156 {offsets = [0, 128], sizes = [8, 128], strides = [1, 1]} : vector<8x256xf32> to vector<8x128xf32>
    %159 = vector.extract_strided_slice %146 {offsets = [0, 256], sizes = [8, 128], strides = [1, 1]} : vector<8x384xf32> to vector<8x128xf32>
    %160 = vector.extract_strided_slice %148 {offsets = [0, 256], sizes = [8, 128], strides = [1, 1]} : vector<8x384xf32> to vector<8x128xf32>
    %161 = arith.addf %160, %19 : vector<8x128xf32>
    %162 = arith.mulf %157, %161 : vector<8x128xf32>
    %163 = arith.addf %159, %162 : vector<8x128xf32>
    %164 = math.tanh %163 : vector<8x128xf32>
    %165 = arith.subf %145, %164 : vector<8x128xf32>
    %166 = arith.mulf %158, %165 : vector<8x128xf32>
    %167 = arith.addf %164, %166 : vector<8x128xf32>
    %c56 = arith.constant 56 : index
    %c0_35 = arith.constant 0 : index
    %168 = vector.load %arg9[%c56, %c0_35] : memref<64x384xf32, #tpu.memory_space<vmem>>, vector<8x384xf32>
    %169 = arith.truncf %167 : vector<8x128xf32> to vector<8x128xbf16>
    %cst_36 = arith.constant dense<0.000000e+00> : vector<8x384xf32>
    %170 = tpu.matmul %169, %20, %cst_36 {dimension_numbers = #tpu.dot_dimension_numbers<[1], [0], [0], [1], [0, 0, 1, 1], [], []>} : vector<8x128xbf16>, vector<128x384xbf16>, vector<8x384xf32> -> vector<8x384xf32>
    %171 = vector.extract_strided_slice %168 {offsets = [0, 0], sizes = [8, 256], strides = [1, 1]} : vector<8x384xf32> to vector<8x256xf32>
    %172 = vector.extract_strided_slice %170 {offsets = [0, 0], sizes = [8, 256], strides = [1, 1]} : vector<8x384xf32> to vector<8x256xf32>
    %173 = arith.addf %171, %172 : vector<8x256xf32>
    %174 = arith.negf %173 : vector<8x256xf32>
    %175 = math.exp %174 : vector<8x256xf32>
    %cst_37 = arith.constant 1.000000e+00 : f32
    %176 = vector.broadcast %cst_37 : f32 to vector<8x256xf32>
    %177 = arith.addf %176, %175 : vector<8x256xf32>
    %178 = arith.divf %176, %177 : vector<8x256xf32>
    %179 = vector.extract_strided_slice %178 {offsets = [0, 0], sizes = [8, 128], strides = [1, 1]} : vector<8x256xf32> to vector<8x128xf32>
    %180 = vector.extract_strided_slice %178 {offsets = [0, 128], sizes = [8, 128], strides = [1, 1]} : vector<8x256xf32> to vector<8x128xf32>
    %181 = vector.extract_strided_slice %168 {offsets = [0, 256], sizes = [8, 128], strides = [1, 1]} : vector<8x384xf32> to vector<8x128xf32>
    %182 = vector.extract_strided_slice %170 {offsets = [0, 256], sizes = [8, 128], strides = [1, 1]} : vector<8x384xf32> to vector<8x128xf32>
    %183 = arith.addf %182, %19 : vector<8x128xf32>
    %184 = arith.mulf %179, %183 : vector<8x128xf32>
    %185 = arith.addf %181, %184 : vector<8x128xf32>
    %186 = math.tanh %185 : vector<8x128xf32>
    %187 = arith.subf %167, %186 : vector<8x128xf32>
    %188 = arith.mulf %180, %187 : vector<8x128xf32>
    %189 = arith.addf %186, %188 : vector<8x128xf32>
    %c0_38 = arith.constant 0 : index
    %c0_39 = arith.constant 0 : index
    %190 = vector.load %arg6[%c0_38, %c0_39] : memref<128x128xf32, #tpu.memory_space<vmem>>, vector<128x128xf32>
    %cst_40 = arith.constant dense<0.000000e+00> : vector<8x128xf32>
    %191 = tpu.matmul %189, %190, %cst_40 {dimension_numbers = #tpu.dot_dimension_numbers<[1], [0], [0], [1], [0, 0, 1, 1], [], []>} : vector<8x128xf32>, vector<128x128xf32>, vector<8x128xf32> -> vector<8x128xf32>
    %c0_41 = arith.constant 0 : index
    %c0_42 = arith.constant 0 : index
    %192 = vector.load %arg7[%c0_41, %c0_42] : memref<1x128xf32, #tpu.memory_space<vmem>>, vector<1x128xf32>
    %193 = vector.broadcast %192 : vector<1x128xf32> to vector<8x128xf32>
    %194 = arith.addf %191, %193 : vector<8x128xf32>
    %c0_43 = arith.constant 0 : index
    %c0_44 = arith.constant 0 : index
    %195 = vector.load %arg8[%c0_43, %c0_44] : memref<8x128xf32, #tpu.memory_space<vmem>>, vector<8x128xf32>
    tpu.vector_store %arg8[%c0_43, %c0_44], %194 {strides = array<i32>} : memref<8x128xf32, #tpu.memory_space<vmem>>, vector<8x128xf32>,
    return
  }
}

</mosaic_0001>

<llo_original>
// kernel: gru_model_forward.1
$region0: #{gru_model_forward.1}
  #allocation0 [shape = 'u32[]', space=smem, size = 0x4, offset = 0x4, fixed_abs, tag = 'smem constant byte address 0x4 - core index']
  #allocation1 [shape = 'u32[144,128]{1,0:T(1,128)}', space=vmem, size = 0x12000, scoped, tag = 'internal scratch']
  #allocation2 [shape = 'f32[64,384]{1,0:T(8,128)}', space=vmem, size = 0x18000, scoped, tag = 'scratch operand']
  %s0 = inlined_call_operand.vmem [shape: s32[64,1], index: 0, kind: input, shape index: {}]
  %s1 = inlined_call_operand.vmem [shape: f32[100,64], index: 1, kind: input, shape index: {}]
  %s2 = inlined_call_operand.hbm [shape: bf16[64,384], index: 2, kind: input, shape index: {}]
  %s3 = inlined_call_operand.vmem [shape: bf16[128,384], index: 3, kind: input, shape index: {}]
  %s4 = inlined_call_operand.vmem [shape: f32[1,384], index: 4, kind: input, shape index: {}]
  %s5 = inlined_call_operand.vmem [shape: f32[1,128], index: 5, kind: input, shape index: {}]
  %s6 = inlined_call_operand.hbm [shape: f32[128,128], index: 6, kind: input, shape index: {}]
  %s7 = inlined_call_operand.vmem [shape: f32[1,128], index: 7, kind: input, shape index: {}]
  %s8 = inlined_call_operand.vmem [shape: f32[8,128], index: 8, kind: output, shape index: {}]
  %s9 = sld [smem:[#allocation0]]
  $region50: #{gru_model_forward.1} parent=0
    _
  %s11 = ssub.s32 1, %s9
  %s12 = scalar_select 0, %s11, %s9
  $region1: #{gru_model_forward.1} parent=0
    #allocation3 [shape = 'u8[49152]{0}', space=vmem, size = 0xc000, scoped, tag = 'input window, operand 2, single buffered']
    #allocation4 [shape = 's32[1]{0}', space=sflag, size = 0x4, scoped, tag = 'scoped memory for gru_model_forward.1']
    #allocation5 [shape = 'u8[65536]{0}', space=vmem, size = 0x10000, scoped, tag = 'input window, operand 6, single buffered']
    #allocation6 [shape = 's32[1]{0}', space=sflag, size = 0x4, scoped, tag = 'scoped memory for gru_model_forward.1']
    %13 = vsyncpa [#allocation4], 0
    %14 = vsyncpa [#allocation6], 0
    // Predicated region
    $region2: #{gru_model_forward.1} parent=1 // pred_check
      _
    $region3: #{gru_model_forward.1} parent=1 // pred_check_branch
      %16 = sbr.rel (0) target = $region5
    $region4: #{gru_model_forward.1} parent=1 // pred_region
      _
    $region5: #{gru_model_forward.1} parent=1 // pred_fallthru
      _
    // Predicated region
    $region6: #{gru_model_forward.1} parent=1 // pred_check
      _
    $region7: #{gru_model_forward.1} parent=1 // pred_check_branch
      %18 = sbr.rel (0) target = $region9
    $region8: #{gru_model_forward.1} parent=1 // pred_region
      _
    $region9: #{gru_model_forward.1} parent=1 // pred_fallthru
      _
    // Predicated region
    $region10: #{gru_model_forward.1} parent=1 // pred_check
      _
    $region11: #{gru_model_forward.1} parent=1 // pred_check_branch
      %20 = sbr.rel (0) target = $region13
    $region12: #{gru_model_forward.1} parent=1 // pred_region
      %s22 = ssub.s32 1536, 1536
      %23 = vsyncadd [#allocation4], %s22
      %s24 = sshll.u32 [#allocation3], 4
      %s25 = int_to_ptr.vmem [resolvable:$true] %s24
      %30 = dma.hbm_to_vmem [thread:$0]  %s2, 1536, %s25, [#allocation4], 192, 192, 12
    $region13: #{gru_model_forward.1} parent=1 // pred_fallthru
      _
    // Predicated region
    $region14: #{gru_model_forward.1} parent=1 // pred_check
      _
    $region15: #{gru_model_forward.1} parent=1 // pred_check_branch
      %32 = sbr.rel (0) target = $region17
    $region16: #{gru_model_forward.1} parent=1 // pred_region
      _
    $region17: #{gru_model_forward.1} parent=1 // pred_fallthru
      _
    // Predicated region
    $region18: #{gru_model_forward.1} parent=1 // pred_check
      _
    $region19: #{gru_model_forward.1} parent=1 // pred_check_branch
      %34 = sbr.rel (0) target = $region21
    $region20: #{gru_model_forward.1} parent=1 // pred_region
      _
    $region21: #{gru_model_forward.1} parent=1 // pred_fallthru
      _
    // Predicated region
    $region22: #{gru_model_forward.1} parent=1 // pred_check
      _
    $region23: #{gru_model_forward.1} parent=1 // pred_check_branch
      %36 = sbr.rel (0) target = $region25
    $region24: #{gru_model_forward.1} parent=1 // pred_region
      _
    $region25: #{gru_model_forward.1} parent=1 // pred_fallthru
      _
    // Predicated region
    $region26: #{gru_model_forward.1} parent=1 // pred_check
      _
    $region27: #{gru_model_forward.1} parent=1 // pred_check_branch
      %38 = sbr.rel (0) target = $region29
    $region28: #{gru_model_forward.1} parent=1 // pred_region
      %s40 = ssub.s32 2048, 2048
      %41 = vsyncadd [#allocation6], %s40
      %s42 = sshll.u32 [#allocation5], 4
      %s43 = int_to_ptr.vmem [resolvable:$true] %s42
      %48 = dma.hbm_to_vmem [thread:$0]  %s6, 2048, %s43, [#allocation6], 128, 128, 8
    $region29: #{gru_model_forward.1} parent=1 // pred_fallthru
      _
    // Predicated region
    $region30: #{gru_model_forward.1} parent=1 // pred_check
      _
    $region31: #{gru_model_forward.1} parent=1 // pred_check_branch
      %50 = sbr.rel (0) target = $region33
    $region32: #{gru_model_forward.1} parent=1 // pred_region
      _
    $region33: #{gru_model_forward.1} parent=1 // pred_fallthru
      _
    // Predicated region
    $region34: #{gru_model_forward.1} parent=1 // pred_check
      _
    $region35: #{gru_model_forward.1} parent=1 // pred_check_branch
      %52 = sbr.rel (0) target = $region37
    $region36: #{gru_model_forward.1} parent=1 // pred_region
      %53 = dma.done [#allocation4], 1536
    $region37: #{gru_model_forward.1} parent=1 // pred_fallthru
      _
    // Predicated region
    $region38: #{gru_model_forward.1} parent=1 // pred_check
      _
    $region39: #{gru_model_forward.1} parent=1 // pred_check_branch
      %55 = sbr.rel (0) target = $region41
    $region40: #{gru_model_forward.1} parent=1 // pred_region
      %56 = dma.done [#allocation6], 2048
    $region41: #{gru_model_forward.1} parent=1 // pred_fallthru
      _
    %v58 = vld [vmem:[%s0] sm:$0xff]
    %v59 = vld [vmem:[%s0 + $0x8] sm:$0xff]
    %v60 = vld [vmem:[%s0 + $0x10] sm:$0xff]
    %v61 = vld [vmem:[%s0 + $0x18] sm:$0xff]
    %v62 = vld [vmem:[%s0 + $0x20] sm:$0xff]
    %v63 = vld [vmem:[%s0 + $0x28] sm:$0xff]
    %v64 = vld [vmem:[%s0 + $0x30] sm:$0xff]
    %v65 = vld [vmem:[%s0 + $0x38] sm:$0xff]
    %v66 = vlaneseq
    %v67 = vand.u32 %v66, 127
    %68 = vset.pattern.permute.xlu0 0
    %69 = vperm.xlu0 %68, %v58
    %v70 = vpop.permute.xlu0 %69
    %71 = vset.pattern.permute.xlu0 0
    %72 = vperm.xlu0 %71, %v59
    %v73 = vpop.permute.xlu0 %72
    %74 = vset.pattern.permute.xlu0 0
    %75 = vperm.xlu0 %74, %v60
    %v76 = vpop.permute.xlu0 %75
    %77 = vset.pattern.permute.xlu0 0
    %78 = vperm.xlu0 %77, %v61
    %v79 = vpop.permute.xlu0 %78
    %80 = vset.pattern.permute.xlu0 0
    %81 = vperm.xlu0 %80, %v62
    %v82 = vpop.permute.xlu0 %81
    %83 = vset.pattern.permute.xlu0 0
    %84 = vperm.xlu0 %83, %v63
    %v85 = vpop.permute.xlu0 %84
    %86 = vset.pattern.permute.xlu0 0
    %87 = vperm.xlu0 %86, %v64
    %v88 = vpop.permute.xlu0 %87
    %89 = vset.pattern.permute.xlu0 0
    %90 = vperm.xlu0 %89, %v65
    %v91 = vpop.permute.xlu0 %90
    %vm92 = vcmp.eq.s32.totalorder %v70, %v67
    %vm93 = vcmp.eq.s32.totalorder %v73, %v67
    %vm94 = vcmp.eq.s32.totalorder %v76, %v67
    %vm95 = vcmp.eq.s32.totalorder %v79, %v67
    %vm96 = vcmp.eq.s32.totalorder %v82, %v67
    %vm97 = vcmp.eq.s32.totalorder %v85, %v67
    %vm98 = vcmp.eq.s32.totalorder %v88, %v67
    %vm99 = vcmp.eq.s32.totalorder %v91, %v67
    %v100 = vsel %vm92, 1, 0
    %v101 = vsel %vm93, 1, 0
    %v102 = vsel %vm94, 1, 0
    %v103 = vsel %vm95, 1, 0
    %v104 = vsel %vm96, 1, 0
    %v105 = vsel %vm97, 1, 0
    %v106 = vsel %vm98, 1, 0
    %v107 = vsel %vm99, 1, 0
    %v108 = vcvt.s32.f32 %v100
    %v109 = vcvt.s32.f32 %v101
    %v110 = vcvt.s32.f32 %v102
    %v111 = vcvt.s32.f32 %v103
    %v112 = vcvt.s32.f32 %v104
    %v113 = vcvt.s32.f32 %v105
    %v114 = vcvt.s32.f32 %v106
    %v115 = vcvt.s32.f32 %v107
    %v116 = vpack.c.bf16 %v109, %v108
    %v117 = vpack.c.bf16 %v111, %v110
    %v118 = vpack.c.bf16 %v113, %v112
    %v119 = vpack.c.bf16 %v115, %v114
    %v120 = vld [vmem:[%s1] sm:$0xff]
    %v121 = vld [vmem:[%s1 + $0x8] sm:$0xff]
    %v122 = vld [vmem:[%s1 + $0x10] sm:$0xff]
    %v123 = vld [vmem:[%s1 + $0x18] sm:$0xff]
    %v124 = vld [vmem:[%s1 + $0x20] sm:$0xff]
    %v125 = vld [vmem:[%s1 + $0x28] sm:$0xff]
    %v126 = vld [vmem:[%s1 + $0x30] sm:$0xff]
    %v127 = vld [vmem:[%s1 + $0x38] sm:$0xff]
    %v128 = vld [vmem:[%s1 + $0x40] sm:$0xff]
    %v129 = vld [vmem:[%s1 + $0x48] sm:$0xff]
    %v130 = vld [vmem:[%s1 + $0x50] sm:$0xff]
    %v131 = vld [vmem:[%s1 + $0x58] sm:$0xff]
    %v132 = vld [vmem:[%s1 + $0x60] sm:$0xf]
    %v133 = vpack.c.bf16 %v121, %v120
    %v134 = vpack.c.bf16 %v123, %v122
    %v135 = vpack.c.bf16 %v125, %v124
    %v136 = vpack.c.bf16 %v127, %v126
    %v137 = vpack.c.bf16 %v129, %v128
    %v138 = vpack.c.bf16 %v131, %v130
    %v139 = vpack.c.bf16 %v132, %v132
    %vm140 = vcmask 818176
    %v142 = vsel %vm140, %v116, 0
    %v145 = vsel %vm140, %v117, 0
    %v148 = vsel %vm140, %v118, 0
    %v151 = vsel %vm140, %v119, 0
    %vm153 = vcmask 1041408
    %v155 = vsel %vm153, %v139, 0
    %157 = vmatprep.subr.bf16.mxu0 0
    %158 = vmatpush1.bf16.msra.mxu0 %v133
    %159 = vmatprep.subr.bf16.mxu0 0
    %160 = vmatpush1.bf16.msra.mxu0 %v134
    %161 = vmatprep.subr.bf16.mxu0 0
    %162 = vmatpush1.bf16.msra.mxu0 %v135
    %163 = vmatprep.subr.bf16.mxu0 0
    %164 = vmatpush1.bf16.msra.mxu0 %v136
    %165 = vmatprep.subr.bf16.mxu0 0
    %166 = vmatpush1.bf16.msra.mxu0 %v137
    %167 = vmatprep.subr.bf16.mxu0 0
    %168 = vmatpush1.bf16.msra.mxu0 %v138
    %169 = vmatprep.subr.bf16.mxu0 0
    %170 = vmatpush1.bf16.msra.mxu0 %v155
    %171 = vmatprep.subr.bf16.mxu0 0
    %172 = vmatpush1.bf16.msra.mxu0 0
    %173 = vmatprep.subr.bf16.mxu0 0
    %174 = vmatpush1.bf16.msra.mxu0 0
    %175 = vmatprep.subr.bf16.mxu0 0
    %176 = vmatpush1.bf16.msra.mxu0 0
    %177 = vmatprep.subr.bf16.mxu0 0
    %178 = vmatpush1.bf16.msra.mxu0 0
    %179 = vmatprep.subr.bf16.mxu0 0
    %180 = vmatpush1.bf16.msra.mxu0 0
    %181 = vmatprep.subr.bf16.mxu0 0
    %182 = vmatpush1.bf16.msra.mxu0 0
    %183 = vmatprep.subr.bf16.mxu0 0
    %184 = vmatpush1.bf16.msra.mxu0 0
    %185 = vmatprep.subr.bf16.mxu0 0
    %186 = vmatpush1.bf16.msra.mxu0 0
    %187 = vmatprep.subr.bf16.mxu0 0
    %188 = vmatpush1.bf16.msra.mxu0 0
    %189 = vmatprep.mubr.bf16.mxu0 0
    %190 = vmatmul.mubr.bf16.gmra.mrb[0].mxu0 %v142
    %v191 = vpop.f32.mrb[0].mxu0
    %v192 = vadd.f32 0.0, %v191
    %v193 = vpop.f32.mrb[0].mxu0
    %v194 = vpop.f32.mrb[0].mxu0
    %v195 = vadd.f32 0.0, %v194
    %v196 = vpop.f32.mrb[0].mxu0
    %197 = vmatprep.mubr.bf16.mxu0 0
    %198 = vmatmul.mubr.bf16.gmra.mrb[0].mxu0 %v145
    %v199 = vpop.f32.mrb[0].mxu0
    %v200 = vadd.f32 0.0, %v199
    %v201 = vpop.f32.mrb[0].mxu0
    %v202 = vpop.f32.mrb[0].mxu0
    %v203 = vadd.f32 0.0, %v202
    %v204 = vpop.f32.mrb[0].mxu0
    %205 = vmatprep.mubr.bf16.mxu0 0
    %206 = vmatmul.mubr.bf16.gmra.mrb[0].mxu0 %v148
    %v207 = vpop.f32.mrb[0].mxu0
    %v208 = vadd.f32 0.0, %v207
    %v209 = vpop.f32.mrb[0].mxu0
    %v210 = vpop.f32.mrb[0].mxu0
    %v211 = vadd.f32 0.0, %v210
    %v212 = vpop.f32.mrb[0].mxu0
    %213 = vmatprep.mubr.bf16.mxu0 0
    %214 = vmatmul.mubr.bf16.gmra.mrb[0].mxu0 %v151
    %v215 = vpop.f32.mrb[0].mxu0
    %v216 = vadd.f32 0.0, %v215
    %v217 = vpop.f32.mrb[0].mxu0
    %v218 = vpop.f32.mrb[0].mxu0
    %v219 = vadd.f32 0.0, %v218
    %v220 = vpop.f32.mrb[0].mxu0
    %221 = vdwg.mxu0
    %v222 = vpack.c.bf16 %v195, %v192
    %v223 = vpack.c.bf16 %v203, %v200
    %v224 = vpack.c.bf16 %v211, %v208
    %v225 = vpack.c.bf16 %v219, %v216
    %v226 = vld [vmem:[#allocation3] sm:$0xff]
    %v227 = vld [vmem:[#allocation3 + $0x8] sm:$0xf]
    %v228 = vld [vmem:[#allocation3 + $0xc] sm:$0xff]
    %v229 = vld [vmem:[#allocation3 + $0x14] sm:$0xf]
    %v230 = vld [vmem:[#allocation3 + $0x18] sm:$0xff]
    %v231 = vld [vmem:[#allocation3 + $0x20] sm:$0xf]
    %v232 = vld [vmem:[#allocation3 + $0x24] sm:$0xff]
    %v233 = vld [vmem:[#allocation3 + $0x2c] sm:$0xf]
    %v234 = vld [vmem:[#allocation3 + $0x30] sm:$0xff]
    %v235 = vld [vmem:[#allocation3 + $0x38] sm:$0xf]
    %v236 = vld [vmem:[#allocation3 + $0x3c] sm:$0xff]
    %v237 = vld [vmem:[#allocation3 + $0x44] sm:$0xf]
    %v238 = vld [vmem:[#allocation3 + $0x48] sm:$0xff]
    %v239 = vld [vmem:[#allocation3 + $0x50] sm:$0xf]
    %v240 = vld [vmem:[#allocation3 + $0x54] sm:$0xff]
    %v241 = vld [vmem:[#allocation3 + $0x5c] sm:$0xf]
    %v242 = vld [vmem:[%s4] sm:$0x7]
    %v244 = vlaneseq
    %v245 = vshrl.u32 %v244, 7
    %v246 = vsub.s32 0, %v245
    %v247 = vrot.slane %v242, %v246
    %v248 = vlaneseq
    %v249 = vshrl.u32 %v248, 7
    %v250 = vsub.s32 1, %v249
    %v251 = vrot.slane %v242, %v250
    %v252 = vlaneseq
    %v253 = vshrl.u32 %v252, 7
    %v254 = vsub.s32 2, %v253
    %v255 = vrot.slane %v242, %v254
    %v275 = vunpack.c.l.b16 %v226
    %v276 = vunpack.c.h.b16 %v226
    %v277 = vunpack.c.l.b16 %v227
    %v278 = vunpack.c.l.b16 %v228
    %v279 = vunpack.c.h.b16 %v228
    %v280 = vunpack.c.l.b16 %v229
    %v281 = vunpack.c.l.b16 %v230
    %v282 = vunpack.c.h.b16 %v230
    %v283 = vunpack.c.l.b16 %v231
    %v284 = vunpack.c.l.b16 %v232
    %v285 = vunpack.c.h.b16 %v232
    %v286 = vunpack.c.l.b16 %v233
    %v287 = vunpack.c.l.b16 %v234
    %v288 = vunpack.c.h.b16 %v234
    %v289 = vunpack.c.l.b16 %v235
    %v290 = vunpack.c.l.b16 %v236
    %v291 = vunpack.c.h.b16 %v236
    %v292 = vunpack.c.l.b16 %v237
    %v293 = vunpack.c.l.b16 %v238
    %v294 = vunpack.c.h.b16 %v238
    %v295 = vunpack.c.l.b16 %v239
    %v296 = vunpack.c.l.b16 %v240
    %v297 = vunpack.c.h.b16 %v240
    %v298 = vunpack.c.l.b16 %v241
    %v299 = vpack.c.b16 %v278, %v275
    %v300 = vpack.c.b16 %v279, %v276
    %v301 = vpack.c.b16 %v280, %v277
    %v302 = vpack.c.b16 %v284, %v281
    %v303 = vpack.c.b16 %v285, %v282
    %v304 = vpack.c.b16 %v286, %v283
    %v305 = vpack.c.b16 %v290, %v287
    %v306 = vpack.c.b16 %v291, %v288
    %v307 = vpack.c.b16 %v292, %v289
    %v308 = vpack.c.b16 %v296, %v293
    %v309 = vpack.c.b16 %v297, %v294
    %v310 = vpack.c.b16 %v298, %v295
    %vm323 = vcmask 523264
    %v325 = vsel %vm323, %v222, 0
    %v328 = vsel %vm323, %v223, 0
    %v331 = vsel %vm323, %v224, 0
    %v334 = vsel %vm323, %v225, 0
    %336 = vmatprep.subr.bf16.mxu0 %v300
    %337 = vmatpush1.bf16.msra.mxu0 %v299
    %338 = vmatprep.subr.bf16.mxu0 %v303
    %339 = vmatpush1.bf16.msra.mxu0 %v302
    %340 = vmatprep.subr.bf16.mxu0 %v306
    %341 = vmatpush1.bf16.msra.mxu0 %v305
    %342 = vmatprep.subr.bf16.mxu0 %v309
    %343 = vmatpush1.bf16.msra.mxu0 %v308
    %344 = vmatprep.subr.bf16.mxu0 0
    %345 = vmatpush1.bf16.msra.mxu0 0
    %346 = vmatprep.subr.bf16.mxu0 0
    %347 = vmatpush1.bf16.msra.mxu0 0
    %348 = vmatprep.subr.bf16.mxu0 0
    %349 = vmatpush1.bf16.msra.mxu0 0
    %350 = vmatprep.subr.bf16.mxu0 0
    %351 = vmatpush1.bf16.msra.mxu0 0
    %352 = vmatprep.subr.bf16.mxu0 0
    %353 = vmatpush1.bf16.msra.mxu0 0
    %354 = vmatprep.subr.bf16.mxu0 0
    %355 = vmatpush1.bf16.msra.mxu0 0
    %356 = vmatprep.subr.bf16.mxu0 0
    %357 = vmatpush1.bf16.msra.mxu0 0
    %358 = vmatprep.subr.bf16.mxu0 0
    %359 = vmatpush1.bf16.msra.mxu0 0
    %360 = vmatprep.subr.bf16.mxu0 0
    %361 = vmatpush1.bf16.msra.mxu0 0
    %362 = vmatprep.subr.bf16.mxu0 0
    %363 = vmatpush1.bf16.msra.mxu0 0
    %364 = vmatprep.subr.bf16.mxu0 0
    %365 = vmatpush1.bf16.msra.mxu0 0
    %366 = vmatprep.subr.bf16.mxu0 0
    %367 = vmatpush1.bf16.msra.mxu0 0
    %368 = vmatprep.mubr.bf16.mxu0 0
    %369 = vmatmul.mubr.bf16.gmra.mrb[0].mxu0 %v325
    %v370 = vpop.f32.mrb[0].mxu0
    %v371 = vadd.f32 %v247, %v370
    %v372 = vpop.f32.mrb[0].mxu0
    %v373 = vadd.f32 %v251, %v372
    %v374 = vpop.f32.mrb[0].mxu0
    %v375 = vadd.f32 %v247, %v374
    %v376 = vpop.f32.mrb[0].mxu0
    %v377 = vadd.f32 %v251, %v376
    %378 = vmatprep.mubr.bf16.mxu0 0
    %379 = vmatmul.mubr.bf16.gmra.mrb[0].mxu0 %v328
    %v380 = vpop.f32.mrb[0].mxu0
    %v381 = vadd.f32 %v247, %v380
    %v382 = vpop.f32.mrb[0].mxu0
    %v383 = vadd.f32 %v251, %v382
    %v384 = vpop.f32.mrb[0].mxu0
    %v385 = vadd.f32 %v247, %v384
    %v386 = vpop.f32.mrb[0].mxu0
    %v387 = vadd.f32 %v251, %v386
    %388 = vmatprep.mubr.bf16.mxu0 0
    %389 = vmatmul.mubr.bf16.gmra.mrb[0].mxu0 %v331
    %v390 = vpop.f32.mrb[0].mxu0
    %v391 = vadd.f32 %v247, %v390
    %v392 = vpop.f32.mrb[0].mxu0
    %v393 = vadd.f32 %v251, %v392
    %v394 = vpop.f32.mrb[0].mxu0
    %v395 = vadd.f32 %v247, %v394
    %v396 = vpop.f32.mrb[0].mxu0
    %v397 = vadd.f32 %v251, %v396
    %398 = vmatprep.mubr.bf16.mxu0 0
    %399 = vmatmul.mubr.bf16.gmra.mrb[0].mxu0 %v334
    %v400 = vpop.f32.mrb[0].mxu0
    %v401 = vadd.f32 %v247, %v400
    %v402 = vpop.f32.mrb[0].mxu0
    %v403 = vadd.f32 %v251, %v402
    %v404 = vpop.f32.mrb[0].mxu0
    %v405 = vadd.f32 %v247, %v404
    %v406 = vpop.f32.mrb[0].mxu0
    %v407 = vadd.f32 %v251, %v406
    %408 = vdwg.mxu0
    %409 = vmatprep.subr.bf16.mxu0 0
    %410 = vmatpush1.bf16.msra.mxu0 %v301
    %411 = vmatprep.subr.bf16.mxu0 0
    %412 = vmatpush1.bf16.msra.mxu0 %v304
    %413 = vmatprep.subr.bf16.mxu0 0
    %414 = vmatpush1.bf16.msra.mxu0 %v307
    %415 = vmatprep.subr.bf16.mxu0 0
    %416 = vmatpush1.bf16.msra.mxu0 %v310
    %417 = vmatprep.subr.bf16.mxu0 0
    %418 = vmatpush1.bf16.msra.mxu0 0
    %419 = vmatprep.subr.bf16.mxu0 0
    %420 = vmatpush1.bf16.msra.mxu0 0
    %421 = vmatprep.subr.bf16.mxu0 0
    %422 = vmatpush1.bf16.msra.mxu0 0
    %423 = vmatprep.subr.bf16.mxu0 0
    %424 = vmatpush1.bf16.msra.mxu0 0
    %425 = vmatprep.subr.bf16.mxu0 0
    %426 = vmatpush1.bf16.msra.mxu0 0
    %427 = vmatprep.subr.bf16.mxu0 0
    %428 = vmatpush1.bf16.msra.mxu0 0
    %429 = vmatprep.subr.bf16.mxu0 0
    %430 = vmatpush1.bf16.msra.mxu0 0
    %431 = vmatprep.subr.bf16.mxu0 0
    %432 = vmatpush1.bf16.msra.mxu0 0
    %433 = vmatprep.subr.bf16.mxu0 0
    %434 = vmatpush1.bf16.msra.mxu0 0
    %435 = vmatprep.subr.bf16.mxu0 0
    %436 = vmatpush1.bf16.msra.mxu0 0
    %437 = vmatprep.subr.bf16.mxu0 0
    %438 = vmatpush1.bf16.msra.mxu0 0
    %439 = vmatprep.subr.bf16.mxu0 0
    %440 = vmatpush1.bf16.msra.mxu0 0
    %441 = vmatprep.mubr.bf16.mxu0 0
    %442 = vmatmul.mubr.bf16.gmra.mrb[0].mxu0 %v325
    %v443 = vpop.f32.mrb[0].mxu0
    %v444 = vadd.f32 %v255, %v443
    %v445 = vpop.f32.mrb[0].mxu0
    %v446 = vpop.f32.mrb[0].mxu0
    %v447 = vadd.f32 %v255, %v446
    %v448 = vpop.f32.mrb[0].mxu0
    %449 = vmatprep.mubr.bf16.mxu0 0
    %450 = vmatmul.mubr.bf16.gmra.mrb[0].mxu0 %v328
    %v451 = vpop.f32.mrb[0].mxu0
    %v452 = vadd.f32 %v255, %v451
    %v453 = vpop.f32.mrb[0].mxu0
    %v454 = vpop.f32.mrb[0].mxu0
    %v455 = vadd.f32 %v255, %v454
    %v456 = vpop.f32.mrb[0].mxu0
    %457 = vmatprep.mubr.bf16.mxu0 0
    %458 = vmatmul.mubr.bf16.gmra.mrb[0].mxu0 %v331
    %v459 = vpop.f32.mrb[0].mxu0
    %v460 = vadd.f32 %v255, %v459
    %v461 = vpop.f32.mrb[0].mxu0
    %v462 = vpop.f32.mrb[0].mxu0
    %v463 = vadd.f32 %v255, %v462
    %v464 = vpop.f32.mrb[0].mxu0
    %465 = vmatprep.mubr.bf16.mxu0 0
    %466 = vmatmul.mubr.bf16.gmra.mrb[0].mxu0 %v334
    %v467 = vpop.f32.mrb[0].mxu0
    %v468 = vadd.f32 %v255, %v467
    %v469 = vpop.f32.mrb[0].mxu0
    %v470 = vpop.f32.mrb[0].mxu0
    %v471 = vadd.f32 %v255, %v470
    %v472 = vpop.f32.mrb[0].mxu0
    %473 = vdwg.mxu0
    %474 = vst [vmem:[#allocation2] sm:$0xff] %v371
    %475 = vst [vmem:[#allocation2 + $0x8] sm:$0xff] %v373
    %476 = vst [vmem:[#allocation2 + $0x10] sm:$0xff] %v444
    %477 = vst [vmem:[#allocation2 + $0x18] sm:$0xff] %v375
    %478 = vst [vmem:[#allocation2 + $0x20] sm:$0xff] %v377
    %479 = vst [vmem:[#allocation2 + $0x28] sm:$0xff] %v447
    %480 = vst [vmem:[#allocation2 + $0x30] sm:$0xff] %v381
    %481 = vst [vmem:[#allocation2 + $0x38] sm:$0xff] %v383
    %482 = vst [vmem:[#allocation2 + $0x40] sm:$0xff] %v452
    %483 = vst [vmem:[#allocation2 + $0x48] sm:$0xff] %v385
    %484 = vst [vmem:[#allocation2 + $0x50] sm:$0xff] %v387
    %485 = vst [vmem:[#allocation2 + $0x58] sm:$0xff] %v455
    %486 = vst [vmem:[#allocation2 + $0x60] sm:$0xff] %v391
    %487 = vst [vmem:[#allocation2 + $0x68] sm:$0xff] %v393
    %488 = vst [vmem:[#allocation2 + $0x70] sm:$0xff] %v460
    %489 = vst [vmem:[#allocation2 + $0x78] sm:$0xff] %v395
    %490 = vst [vmem:[#allocation2 + $0x80] sm:$0xff] %v397
    %491 = vst [vmem:[#allocation2 + $0x88] sm:$0xff] %v463
    %492 = vst [vmem:[#allocation2 + $0x90] sm:$0xff] %v401
    %493 = vst [vmem:[#allocation2 + $0x98] sm:$0xff] %v403
    %494 = vst [vmem:[#allocation2 + $0xa0] sm:$0xff] %v468
    %495 = vst [vmem:[#allocation2 + $0xa8] sm:$0xff] %v405
    %496 = vst [vmem:[#allocation2 + $0xb0] sm:$0xff] %v407
    %497 = vst [vmem:[#allocation2 + $0xb8] sm:$0xff] %v471
    %v498 = vld [vmem:[%s5] sm:$0x1]
    %v500 = vlaneseq
    %v501 = vshrl.u32 %v500, 7
    %v502 = vsub.s32 0, %v501
    %v503 = vrot.slane %v498, %v502
    %v505 = vld [vmem:[%s3] sm:$0xff]
    %v506 = vld [vmem:[%s3 + $0x8] sm:$0xf]
    %v507 = vld [vmem:[%s3 + $0xc] sm:$0xff]
    %v508 = vld [vmem:[%s3 + $0x14] sm:$0xf]
    %v509 = vld [vmem:[%s3 + $0x18] sm:$0xff]
    %v510 = vld [vmem:[%s3 + $0x20] sm:$0xf]
    %v511 = vld [vmem:[%s3 + $0x24] sm:$0xff]
    %v512 = vld [vmem:[%s3 + $0x2c] sm:$0xf]
    %v513 = vld [vmem:[%s3 + $0x30] sm:$0xff]
    %v514 = vld [vmem:[%s3 + $0x38] sm:$0xf]
    %v515 = vld [vmem:[%s3 + $0x3c] sm:$0xff]
    %v516 = vld [vmem:[%s3 + $0x44] sm:$0xf]
    %v517 = vld [vmem:[%s3 + $0x48] sm:$0xff]
    %v518 = vld [vmem:[%s3 + $0x50] sm:$0xf]
    %v519 = vld [vmem:[%s3 + $0x54] sm:$0xff]
    %v520 = vld [vmem:[%s3 + $0x5c] sm:$0xf]
    %v521 = vld [vmem:[%s3 + $0x60] sm:$0xff]
    %v522 = vld [vmem:[%s3 + $0x68] sm:$0xf]
    %v523 = vld [vmem:[%s3 + $0x6c] sm:$0xff]
    %v524 = vld [vmem:[%s3 + $0x74] sm:$0xf]
    %v525 = vld [vmem:[%s3 + $0x78] sm:$0xff]
    %v526 = vld [vmem:[%s3 + $0x80] sm:$0xf]
    %v527 = vld [vmem:[%s3 + $0x84] sm:$0xff]
    %v528 = vld [vmem:[%s3 + $0x8c] sm:$0xf]
    %v529 = vld [vmem:[%s3 + $0x90] sm:$0xff]
    %v530 = vld [vmem:[%s3 + $0x98] sm:$0xf]
    %v531 = vld [vmem:[%s3 + $0x9c] sm:$0xff]
    %v532 = vld [vmem:[%s3 + $0xa4] sm:$0xf]
    %v533 = vld [vmem:[%s3 + $0xa8] sm:$0xff]
    %v534 = vld [vmem:[%s3 + $0xb0] sm:$0xf]
    %v535 = vld [vmem:[%s3 + $0xb4] sm:$0xff]
    %v536 = vld [vmem:[%s3 + $0xbc] sm:$0xf]
    %v537 = vld [vmem:[#allocation2] sm:$0xff]
    %v538 = vld [vmem:[#allocation2 + $0x8] sm:$0xff]
    %v539 = vld [vmem:[#allocation2 + $0x10] sm:$0xff]
    %v540 = vxor.u32 %v537, 2147483648
    %v541 = vxor.u32 %v538, 2147483648
    %v542 = vmul.f32 %v540, 1.442695
    %v543 = vpow.pop %v542
    %v544 = vmul.f32 %v541, 1.442695
    %v545 = vpow.pop %v544
    %v546 = vadd.f32 %v543, 1.0
    %v547 = vadd.f32 %v545, 1.0
    %v548 = vrcp.pop %v546
    %v549 = vmul.f32 1.0, %v548
    %v550 = vrcp.pop %v547
    %v551 = vmul.f32 1.0, %v550
    %v552 = vmul.f32 %v549, %v503
    %v553 = vadd.f32 %v539, %v552
    %v554 = vtanh.pop %v553
    %v555 = vmul.f32 %v551, %v554
    %v556 = vsub.f32 %v554, %v555
    %v557 = vld [vmem:[#allocation2 + $0x18] sm:$0xff]
    %v558 = vld [vmem:[#allocation2 + $0x20] sm:$0xff]
    %v559 = vld [vmem:[#allocation2 + $0x28] sm:$0xff]
    %v560 = vpack.c.bf16 %v556, %v556
    %v593 = vunpack.c.l.b16 %v505
    %v594 = vunpack.c.h.b16 %v505
    %v595 = vunpack.c.l.b16 %v506
    %v596 = vunpack.c.l.b16 %v507
    %v597 = vunpack.c.h.b16 %v507
    %v598 = vunpack.c.l.b16 %v508
    %v599 = vunpack.c.l.b16 %v509
    %v600 = vunpack.c.h.b16 %v509
    %v601 = vunpack.c.l.b16 %v510
    %v602 = vunpack.c.l.b16 %v511
    %v603 = vunpack.c.h.b16 %v511
    %v604 = vunpack.c.l.b16 %v512
    %v605 = vunpack.c.l.b16 %v513
    %v606 = vunpack.c.h.b16 %v513
    %v607 = vunpack.c.l.b16 %v514
    %v608 = vunpack.c.l.b16 %v515
    %v609 = vunpack.c.h.b16 %v515
    %v610 = vunpack.c.l.b16 %v516
    %v611 = vunpack.c.l.b16 %v517
    %v612 = vunpack.c.h.b16 %v517
    %v613 = vunpack.c.l.b16 %v518
    %v614 = vunpack.c.l.b16 %v519
    %v615 = vunpack.c.h.b16 %v519
    %v616 = vunpack.c.l.b16 %v520
    %v617 = vunpack.c.l.b16 %v521
    %v618 = vunpack.c.h.b16 %v521
    %v619 = vunpack.c.l.b16 %v522
    %v620 = vunpack.c.l.b16 %v523
    %v621 = vunpack.c.h.b16 %v523
    %v622 = vunpack.c.l.b16 %v524
    %v623 = vunpack.c.l.b16 %v525
    %v624 = vunpack.c.h.b16 %v525
    %v625 = vunpack.c.l.b16 %v526
    %v626 = vunpack.c.l.b16 %v527
    %v627 = vunpack.c.h.b16 %v527
    %v628 = vunpack.c.l.b16 %v528
    %v629 = vunpack.c.l.b16 %v529
    %v630 = vunpack.c.h.b16 %v529
    %v631 = vunpack.c.l.b16 %v530
    %v632 = vunpack.c.l.b16 %v531
    %v633 = vunpack.c.h.b16 %v531
    %v634 = vunpack.c.l.b16 %v532
    %v635 = vunpack.c.l.b16 %v533
    %v636 = vunpack.c.h.b16 %v533
    %v637 = vunpack.c.l.b16 %v534
    %v638 = vunpack.c.l.b16 %v535
    %v639 = vunpack.c.h.b16 %v535
    %v640 = vunpack.c.l.b16 %v536
    %v641 = vpack.c.b16 %v596, %v593
    %v642 = vpack.c.b16 %v597, %v594
    %v643 = vpack.c.b16 %v598, %v595
    %v644 = vpack.c.b16 %v602, %v599
    %v645 = vpack.c.b16 %v603, %v600
    %v646 = vpack.c.b16 %v604, %v601
    %v647 = vpack.c.b16 %v608, %v605
    %v648 = vpack.c.b16 %v609, %v606
    %v649 = vpack.c.b16 %v610, %v607
    %v650 = vpack.c.b16 %v614, %v611
    %v651 = vpack.c.b16 %v615, %v612
    %v652 = vpack.c.b16 %v616, %v613
    %v653 = vpack.c.b16 %v620, %v617
    %v654 = vpack.c.b16 %v621, %v618
    %v655 = vpack.c.b16 %v622, %v619
    %v656 = vpack.c.b16 %v626, %v623
    %v657 = vpack.c.b16 %v627, %v624
    %v658 = vpack.c.b16 %v628, %v625
    %v659 = vpack.c.b16 %v632, %v629
    %v660 = vpack.c.b16 %v633, %v630
    %v661 = vpack.c.b16 %v634, %v631
    %v662 = vpack.c.b16 %v638, %v635
    %v663 = vpack.c.b16 %v639, %v636
    %v664 = vpack.c.b16 %v640, %v637
    %689 = vmatprep.subr.bf16.mxu0 %v642
    %690 = vmatpush1.bf16.msra.mxu0 %v641
    %691 = vmatprep.subr.bf16.mxu0 %v645
    %692 = vmatpush1.bf16.msra.mxu0 %v644
    %693 = vmatprep.subr.bf16.mxu0 %v648
    %694 = vmatpush1.bf16.msra.mxu0 %v647
    %695 = vmatprep.subr.bf16.mxu0 %v651
    %696 = vmatpush1.bf16.msra.mxu0 %v650
    %697 = vmatprep.subr.bf16.mxu0 %v654
    %698 = vmatpush1.bf16.msra.mxu0 %v653
    %699 = vmatprep.subr.bf16.mxu0 %v657
    %700 = vmatpush1.bf16.msra.mxu0 %v656
    %701 = vmatprep.subr.bf16.mxu0 %v660
    %702 = vmatpush1.bf16.msra.mxu0 %v659
    %703 = vmatprep.subr.bf16.mxu0 %v663
    %704 = vmatpush1.bf16.msra.mxu0 %v662
    %705 = vmatprep.subr.bf16.mxu0 0
    %706 = vmatpush1.bf16.msra.mxu0 0
    %707 = vmatprep.subr.bf16.mxu0 0
    %708 = vmatpush1.bf16.msra.mxu0 0
    %709 = vmatprep.subr.bf16.mxu0 0
    %710 = vmatpush1.bf16.msra.mxu0 0
    %711 = vmatprep.subr.bf16.mxu0 0
    %712 = vmatpush1.bf16.msra.mxu0 0
    %713 = vmatprep.subr.bf16.mxu0 0
    %714 = vmatpush1.bf16.msra.mxu0 0
    %715 = vmatprep.subr.bf16.mxu0 0
    %716 = vmatpush1.bf16.msra.mxu0 0
    %717 = vmatprep.subr.bf16.mxu0 0
    %718 = vmatpush1.bf16.msra.mxu0 0
    %719 = vmatprep.subr.bf16.mxu0 0
    %720 = vmatpush1.bf16.msra.mxu0 0
    %721 = vmatprep.mubr.bf16.mxu0 0
    %722 = vmatmul.mubr.bf16.gmra.mrb[0].mxu0 %v560
    %v723 = vpop.f32.mrb[0].mxu0
    %v724 = vadd.f32 0.0, %v723
    %v725 = vpop.f32.mrb[0].mxu0
    %v726 = vadd.f32 0.0, %v725
    %v727 = vpop.f32.mrb[0].mxu0
    %v728 = vpop.f32.mrb[0].mxu0
    %729 = vdwg.mxu0
    %730 = vmatprep.subr.bf16.mxu0 0
    %731 = vmatpush1.bf16.msra.mxu0 %v643
    %732 = vmatprep.subr.bf16.mxu0 0
    %733 = vmatpush1.bf16.msra.mxu0 %v646
    %734 = vmatprep.subr.bf16.mxu0 0
    %735 = vmatpush1.bf16.msra.mxu0 %v649
    %736 = vmatprep.subr.bf16.mxu0 0
    %737 = vmatpush1.bf16.msra.mxu0 %v652
    %738 = vmatprep.subr.bf16.mxu0 0
    %739 = vmatpush1.bf16.msra.mxu0 %v655
    %740 = vmatprep.subr.bf16.mxu0 0
    %741 = vmatpush1.bf16.msra.mxu0 %v658
    %742 = vmatprep.subr.bf16.mxu0 0
    %743 = vmatpush1.bf16.msra.mxu0 %v661
    %744 = vmatprep.subr.bf16.mxu0 0
    %745 = vmatpush1.bf16.msra.mxu0 %v664
    %746 = vmatprep.subr.bf16.mxu0 0
    %747 = vmatpush1.bf16.msra.mxu0 0
    %748 = vmatprep.subr.bf16.mxu0 0
    %749 = vmatpush1.bf16.msra.mxu0 0
    %750 = vmatprep.subr.bf16.mxu0 0
    %751 = vmatpush1.bf16.msra.mxu0 0
    %752 = vmatprep.subr.bf16.mxu0 0
    %753 = vmatpush1.bf16.msra.mxu0 0
    %754 = vmatprep.subr.bf16.mxu0 0
    %755 = vmatpush1.bf16.msra.mxu0 0
    %756 = vmatprep.subr.bf16.mxu0 0
    %757 = vmatpush1.bf16.msra.mxu0 0
    %758 = vmatprep.subr.bf16.mxu0 0
    %759 = vmatpush1.bf16.msra.mxu0 0
    %760 = vmatprep.subr.bf16.mxu0 0
    %761 = vmatpush1.bf16.msra.mxu0 0
    %762 = vmatprep.mubr.bf16.mxu0 0
    %763 = vmatmul.mubr.bf16.gmra.mrb[0].mxu0 %v560
    %v764 = vpop.f32.mrb[0].mxu0
    %v765 = vadd.f32 0.0, %v764
    %v766 = vpop.f32.mrb[0].mxu0
    %v767 = vpop.f32.mrb[0].mxu0
    %v768 = vpop.f32.mrb[0].mxu0
    %769 = vdwg.mxu0
    %v770 = vadd.f32 %v557, %v724
    %v771 = vadd.f32 %v558, %v726
    %v772 = vxor.u32 %v770, 2147483648
    %v773 = vxor.u32 %v771, 2147483648
    %v774 = vmul.f32 %v772, 1.442695
    %v775 = vpow.pop %v774
    %v776 = vmul.f32 %v773, 1.442695
    %v777 = vpow.pop %v776
    %v778 = vadd.f32 %v775, 1.0
    %v779 = vadd.f32 %v777, 1.0
    %v780 = vrcp.pop %v778
    %v781 = vmul.f32 1.0, %v780
    %v782 = vrcp.pop %v779
    %v783 = vmul.f32 1.0, %v782
    %v784 = vadd.f32 %v765, %v503
    %v785 = vmul.f32 %v781, %v784
    %v786 = vadd.f32 %v559, %v785
    %v787 = vtanh.pop %v786
    %v788 = vsub.f32 %v556, %v787
    %v789 = vmul.f32 %v783, %v788
    %v790 = vadd.f32 %v787, %v789
    %v791 = vld [vmem:[#allocation2 + $0x30] sm:$0xff]
    %v792 = vld [vmem:[#allocation2 + $0x38] sm:$0xff]
    %v793 = vld [vmem:[#allocation2 + $0x40] sm:$0xff]
    %v794 = vpack.c.bf16 %v790, %v790
    %795 = vmatprep.subr.bf16.mxu0 %v642
    %796 = vmatpush1.bf16.msra.mxu0 %v641
    %797 = vmatprep.subr.bf16.mxu0 %v645
    %798 = vmatpush1.bf16.msra.mxu0 %v644
    %799 = vmatprep.subr.bf16.mxu0 %v648
    %800 = vmatpush1.bf16.msra.mxu0 %v647
    %801 = vmatprep.subr.bf16.mxu0 %v651
    %802 = vmatpush1.bf16.msra.mxu0 %v650
    %803 = vmatprep.subr.bf16.mxu0 %v654
    %804 = vmatpush1.bf16.msra.mxu0 %v653
    %805 = vmatprep.subr.bf16.mxu0 %v657
    %806 = vmatpush1.bf16.msra.mxu0 %v656
    %807 = vmatprep.subr.bf16.mxu0 %v660
    %808 = vmatpush1.bf16.msra.mxu0 %v659
    %809 = vmatprep.subr.bf16.mxu0 %v663
    %810 = vmatpush1.bf16.msra.mxu0 %v662
    %811 = vmatprep.subr.bf16.mxu0 0
    %812 = vmatpush1.bf16.msra.mxu0 0
    %813 = vmatprep.subr.bf16.mxu0 0
    %814 = vmatpush1.bf16.msra.mxu0 0
    %815 = vmatprep.subr.bf16.mxu0 0
    %816 = vmatpush1.bf16.msra.mxu0 0
    %817 = vmatprep.subr.bf16.mxu0 0
    %818 = vmatpush1.bf16.msra.mxu0 0
    %819 = vmatprep.subr.bf16.mxu0 0
    %820 = vmatpush1.bf16.msra.mxu0 0
    %821 = vmatprep.subr.bf16.mxu0 0
    %822 = vmatpush1.bf16.msra.mxu0 0
    %823 = vmatprep.subr.bf16.mxu0 0
    %824 = vmatpush1.bf16.msra.mxu0 0
    %825 = vmatprep.subr.bf16.mxu0 0
    %826 = vmatpush1.bf16.msra.mxu0 0
    %827 = vmatprep.mubr.bf16.mxu0 0
    %828 = vmatmul.mubr.bf16.gmra.mrb[0].mxu0 %v794
    %v829 = vpop.f32.mrb[0].mxu0
    %v830 = vadd.f32 0.0, %v829
    %v831 = vpop.f32.mrb[0].mxu0
    %v832 = vadd.f32 0.0, %v831
    %v833 = vpop.f32.mrb[0].mxu0
    %v834 = vpop.f32.mrb[0].mxu0
    %835 = vdwg.mxu0
    %836 = vmatprep.subr.bf16.mxu0 0
    %837 = vmatpush1.bf16.msra.mxu0 %v643
    %838 = vmatprep.subr.bf16.mxu0 0
    %839 = vmatpush1.bf16.msra.mxu0 %v646
    %840 = vmatprep.subr.bf16.mxu0 0
    %841 = vmatpush1.bf16.msra.mxu0 %v649
    %842 = vmatprep.subr.bf16.mxu0 0
    %843 = vmatpush1.bf16.msra.mxu0 %v652
    %844 = vmatprep.subr.bf16.mxu0 0
    %845 = vmatpush1.bf16.msra.mxu0 %v655
    %846 = vmatprep.subr.bf16.mxu0 0
    %847 = vmatpush1.bf16.msra.mxu0 %v658
    %848 = vmatprep.subr.bf16.mxu0 0
    %849 = vmatpush1.bf16.msra.mxu0 %v661
    %850 = vmatprep.subr.bf16.mxu0 0
    %851 = vmatpush1.bf16.msra.mxu0 %v664
    %852 = vmatprep.subr.bf16.mxu0 0
    %853 = vmatpush1.bf16.msra.mxu0 0
    %854 = vmatprep.subr.bf16.mxu0 0
    %855 = vmatpush1.bf16.msra.mxu0 0
    %856 = vmatprep.subr.bf16.mxu0 0
    %857 = vmatpush1.bf16.msra.mxu0 0
    %858 = vmatprep.subr.bf16.mxu0 0
    %859 = vmatpush1.bf16.msra.mxu0 0
    %860 = vmatprep.subr.bf16.mxu0 0
    %861 = vmatpush1.bf16.msra.mxu0 0
    %862 = vmatprep.subr.bf16.mxu0 0
    %863 = vmatpush1.bf16.msra.mxu0 0
    %864 = vmatprep.subr.bf16.mxu0 0
    %865 = vmatpush1.bf16.msra.mxu0 0
    %866 = vmatprep.subr.bf16.mxu0 0
    %867 = vmatpush1.bf16.msra.mxu0 0
    %868 = vmatprep.mubr.bf16.mxu0 0
    %869 = vmatmul.mubr.bf16.gmra.mrb[0].mxu0 %v794
    %v870 = vpop.f32.mrb[0].mxu0
    %v871 = vadd.f32 0.0, %v870
    %v872 = vpop.f32.mrb[0].mxu0
    %v873 = vpop.f32.mrb[0].mxu0
    %v874 = vpop.f32.mrb[0].mxu0
    %875 = vdwg.mxu0
    %v876 = vadd.f32 %v791, %v830
    %v877 = vadd.f32 %v792, %v832
    %v878 = vxor.u32 %v876, 2147483648
    %v879 = vxor.u32 %v877, 2147483648
    %v880 = vmul.f32 %v878, 1.442695
    %v881 = vpow.pop %v880
    %v882 = vmul.f32 %v879, 1.442695
    %v883 = vpow.pop %v882
    %v884 = vadd.f32 %v881, 1.0
    %v885 = vadd.f32 %v883, 1.0
    %v886 = vrcp.pop %v884
    %v887 = vmul.f32 1.0, %v886
    %v888 = vrcp.pop %v885
    %v889 = vmul.f32 1.0, %v888
    %v890 = vadd.f32 %v871, %v503
    %v891 = vmul.f32 %v887, %v890
    %v892 = vadd.f32 %v793, %v891
    %v893 = vtanh.pop %v892
    %v894 = vsub.f32 %v790, %v893
    %v895 = vmul.f32 %v889, %v894
    %v896 = vadd.f32 %v893, %v895
    %v897 = vld [vmem:[#allocation2 + $0x48] sm:$0xff]
    %v898 = vld [vmem:[#allocation2 + $0x50] sm:$0xff]
    %v899 = vld [vmem:[#allocation2 + $0x58] sm:$0xff]
    %v900 = vpack.c.bf16 %v896, %v896
    %901 = vmatprep.subr.bf16.mxu0 %v642
    %902 = vmatpush1.bf16.msra.mxu0 %v641
    %903 = vmatprep.subr.bf16.mxu0 %v645
    %904 = vmatpush1.bf16.msra.mxu0 %v644
    %905 = vmatprep.subr.bf16.mxu0 %v648
    %906 = vmatpush1.bf16.msra.mxu0 %v647
    %907 = vmatprep.subr.bf16.mxu0 %v651
    %908 = vmatpush1.bf16.msra.mxu0 %v650
    %909 = vmatprep.subr.bf16.mxu0 %v654
    %910 = vmatpush1.bf16.msra.mxu0 %v653
    %911 = vmatprep.subr.bf16.mxu0 %v657
    %912 = vmatpush1.bf16.msra.mxu0 %v656
    %913 = vmatprep.subr.bf16.mxu0 %v660
    %914 = vmatpush1.bf16.msra.mxu0 %v659
    %915 = vmatprep.subr.bf16.mxu0 %v663
    %916 = vmatpush1.bf16.msra.mxu0 %v662
    %917 = vmatprep.subr.bf16.mxu0 0
    %918 = vmatpush1.bf16.msra.mxu0 0
    %919 = vmatprep.subr.bf16.mxu0 0
    %920 = vmatpush1.bf16.msra.mxu0 0
    %921 = vmatprep.subr.bf16.mxu0 0
    %922 = vmatpush1.bf16.msra.mxu0 0
    %923 = vmatprep.subr.bf16.mxu0 0
    %924 = vmatpush1.bf16.msra.mxu0 0
    %925 = vmatprep.subr.bf16.mxu0 0
    %926 = vmatpush1.bf16.msra.mxu0 0
    %927 = vmatprep.subr.bf16.mxu0 0
    %928 = vmatpush1.bf16.msra.mxu0 0
    %929 = vmatprep.subr.bf16.mxu0 0
    %930 = vmatpush1.bf16.msra.mxu0 0
    %931 = vmatprep.subr.bf16.mxu0 0
    %932 = vmatpush1.bf16.msra.mxu0 0
    %933 = vmatprep.mubr.bf16.mxu0 0
    %934 = vmatmul.mubr.bf16.gmra.mrb[0].mxu0 %v900
    %v935 = vpop.f32.mrb[0].mxu0
    %v936 = vadd.f32 0.0, %v935
    %v937 = vpop.f32.mrb[0].mxu0
    %v938 = vadd.f32 0.0, %v937
    %v939 = vpop.f32.mrb[0].mxu0
    %v940 = vpop.f32.mrb[0].mxu0
    %941 = vdwg.mxu0
    %942 = vmatprep.subr.bf16.mxu0 0
    %943 = vmatpush1.bf16.msra.mxu0 %v643
    %944 = vmatprep.subr.bf16.mxu0 0
    %945 = vmatpush1.bf16.msra.mxu0 %v646
    %946 = vmatprep.subr.bf16.mxu0 0
    %947 = vmatpush1.bf16.msra.mxu0 %v649
    %948 = vmatprep.subr.bf16.mxu0 0
    %949 = vmatpush1.bf16.msra.mxu0 %v652
    %950 = vmatprep.subr.bf16.mxu0 0
    %951 = vmatpush1.bf16.msra.mxu0 %v655
    %952 = vmatprep.subr.bf16.mxu0 0
    %953 = vmatpush1.bf16.msra.mxu0 %v658
    %954 = vmatprep.subr.bf16.mxu0 0
    %955 = vmatpush1.bf16.msra.mxu0 %v661
    %956 = vmatprep.subr.bf16.mxu0 0
    %957 = vmatpush1.bf16.msra.mxu0 %v664
    %958 = vmatprep.subr.bf16.mxu0 0
    %959 = vmatpush1.bf16.msra.mxu0 0
    %960 = vmatprep.subr.bf16.mxu0 0
    %961 = vmatpush1.bf16.msra.mxu0 0
    %962 = vmatprep.subr.bf16.mxu0 0
    %963 = vmatpush1.bf16.msra.mxu0 0
    %964 = vmatprep.subr.bf16.mxu0 0
    %965 = vmatpush1.bf16.msra.mxu0 0
    %966 = vmatprep.subr.bf16.mxu0 0
    %967 = vmatpush1.bf16.msra.mxu0 0
    %968 = vmatprep.subr.bf16.mxu0 0
    %969 = vmatpush1.bf16.msra.mxu0 0
    %970 = vmatprep.subr.bf16.mxu0 0
    %971 = vmatpush1.bf16.msra.mxu0 0
    %972 = vmatprep.subr.bf16.mxu0 0
    %973 = vmatpush1.bf16.msra.mxu0 0
    %974 = vmatprep.mubr.bf16.mxu0 0
    %975 = vmatmul.mubr.bf16.gmra.mrb[0].mxu0 %v900
    %v976 = vpop.f32.mrb[0].mxu0
    %v977 = vadd.f32 0.0, %v976
    %v978 = vpop.f32.mrb[0].mxu0
    %v979 = vpop.f32.mrb[0].mxu0
    %v980 = vpop.f32.mrb[0].mxu0
    %981 = vdwg.mxu0
    %v982 = vadd.f32 %v897, %v936
    %v983 = vadd.f32 %v898, %v938
    %v984 = vxor.u32 %v982, 2147483648
    %v985 = vxor.u32 %v983, 2147483648
    %v986 = vmul.f32 %v984, 1.442695
    %v987 = vpow.pop %v986
    %v988 = vmul.f32 %v985, 1.442695
    %v989 = vpow.pop %v988
    %v990 = vadd.f32 %v987, 1.0
    %v991 = vadd.f32 %v989, 1.0
    %v992 = vrcp.pop %v990
    %v993 = vmul.f32 1.0, %v992
    %v994 = vrcp.pop %v991
    %v995 = vmul.f32 1.0, %v994
    %v996 = vadd.f32 %v977, %v503
    %v997 = vmul.f32 %v993, %v996
    %v998 = vadd.f32 %v899, %v997
    %v999 = vtanh.pop %v998
    %v1000 = vsub.f32 %v896, %v999
    %v1001 = vmul.f32 %v995, %v1000
    %v1002 = vadd.f32 %v999, %v1001
    %v1003 = vld [vmem:[#allocation2 + $0x60] sm:$0xff]
    %v1004 = vld [vmem:[#allocation2 + $0x68] sm:$0xff]
    %v1005 = vld [vmem:[#allocation2 + $0x70] sm:$0xff]
    %v1006 = vpack.c.bf16 %v1002, %v1002
    %1007 = vmatprep.subr.bf16.mxu0 %v642
    %1008 = vmatpush1.bf16.msra.mxu0 %v641
    %1009 = vmatprep.subr.bf16.mxu0 %v645
    %1010 = vmatpush1.bf16.msra.mxu0 %v644
    %1011 = vmatprep.subr.bf16.mxu0 %v648
    %1012 = vmatpush1.bf16.msra.mxu0 %v647
    %1013 = vmatprep.subr.bf16.mxu0 %v651
    %1014 = vmatpush1.bf16.msra.mxu0 %v650
    %1015 = vmatprep.subr.bf16.mxu0 %v654
    %1016 = vmatpush1.bf16.msra.mxu0 %v653
    %1017 = vmatprep.subr.bf16.mxu0 %v657
    %1018 = vmatpush1.bf16.msra.mxu0 %v656
    %1019 = vmatprep.subr.bf16.mxu0 %v660
    %1020 = vmatpush1.bf16.msra.mxu0 %v659
    %1021 = vmatprep.subr.bf16.mxu0 %v663
    %1022 = vmatpush1.bf16.msra.mxu0 %v662
    %1023 = vmatprep.subr.bf16.mxu0 0
    %1024 = vmatpush1.bf16.msra.mxu0 0
    %1025 = vmatprep.subr.bf16.mxu0 0
    %1026 = vmatpush1.bf16.msra.mxu0 0
    %1027 = vmatprep.subr.bf16.mxu0 0
    %1028 = vmatpush1.bf16.msra.mxu0 0
    %1029 = vmatprep.subr.bf16.mxu0 0
    %1030 = vmatpush1.bf16.msra.mxu0 0
    %1031 = vmatprep.subr.bf16.mxu0 0
    %1032 = vmatpush1.bf16.msra.mxu0 0
    %1033 = vmatprep.subr.bf16.mxu0 0
    %1034 = vmatpush1.bf16.msra.mxu0 0
    %1035 = vmatprep.subr.bf16.mxu0 0
    %1036 = vmatpush1.bf16.msra.mxu0 0
    %1037 = vmatprep.subr.bf16.mxu0 0
    %1038 = vmatpush1.bf16.msra.mxu0 0
    %1039 = vmatprep.mubr.bf16.mxu0 0
    %1040 = vmatmul.mubr.bf16.gmra.mrb[0].mxu0 %v1006
    %v1041 = vpop.f32.mrb[0].mxu0
    %v1042 = vadd.f32 0.0, %v1041
    %v1043 = vpop.f32.mrb[0].mxu0
    %v1044 = vadd.f32 0.0, %v1043
    %v1045 = vpop.f32.mrb[0].mxu0
    %v1046 = vpop.f32.mrb[0].mxu0
    %1047 = vdwg.mxu0
    %1048 = vmatprep.subr.bf16.mxu0 0
    %1049 = vmatpush1.bf16.msra.mxu0 %v643
    %1050 = vmatprep.subr.bf16.mxu0 0
    %1051 = vmatpush1.bf16.msra.mxu0 %v646
    %1052 = vmatprep.subr.bf16.mxu0 0
    %1053 = vmatpush1.bf16.msra.mxu0 %v649
    %1054 = vmatprep.subr.bf16.mxu0 0
    %1055 = vmatpush1.bf16.msra.mxu0 %v652
    %1056 = vmatprep.subr.bf16.mxu0 0
    %1057 = vmatpush1.bf16.msra.mxu0 %v655
    %1058 = vmatprep.subr.bf16.mxu0 0
    %1059 = vmatpush1.bf16.msra.mxu0 %v658
    %1060 = vmatprep.subr.bf16.mxu0 0
    %1061 = vmatpush1.bf16.msra.mxu0 %v661
    %1062 = vmatprep.subr.bf16.mxu0 0
    %1063 = vmatpush1.bf16.msra.mxu0 %v664
    %1064 = vmatprep.subr.bf16.mxu0 0
    %1065 = vmatpush1.bf16.msra.mxu0 0
    %1066 = vmatprep.subr.bf16.mxu0 0
    %1067 = vmatpush1.bf16.msra.mxu0 0
    %1068 = vmatprep.subr.bf16.mxu0 0
    %1069 = vmatpush1.bf16.msra.mxu0 0
    %1070 = vmatprep.subr.bf16.mxu0 0
    %1071 = vmatpush1.bf16.msra.mxu0 0
    %1072 = vmatprep.subr.bf16.mxu0 0
    %1073 = vmatpush1.bf16.msra.mxu0 0
    %1074 = vmatprep.subr.bf16.mxu0 0
    %1075 = vmatpush1.bf16.msra.mxu0 0
    %1076 = vmatprep.subr.bf16.mxu0 0
    %1077 = vmatpush1.bf16.msra.mxu0 0
    %1078 = vmatprep.subr.bf16.mxu0 0
    %1079 = vmatpush1.bf16.msra.mxu0 0
    %1080 = vmatprep.mubr.bf16.mxu0 0
    %1081 = vmatmul.mubr.bf16.gmra.mrb[0].mxu0 %v1006
    %v1082 = vpop.f32.mrb[0].mxu0
    %v1083 = vadd.f32 0.0, %v1082
    %v1084 = vpop.f32.mrb[0].mxu0
    %v1085 = vpop.f32.mrb[0].mxu0
    %v1086 = vpop.f32.mrb[0].mxu0
    %1087 = vdwg.mxu0
    %v1088 = vadd.f32 %v1003, %v1042
    %v1089 = vadd.f32 %v1004, %v1044
    %v1090 = vxor.u32 %v1088, 2147483648
    %v1091 = vxor.u32 %v1089, 2147483648
    %v1092 = vmul.f32 %v1090, 1.442695
    %v1093 = vpow.pop %v1092
    %v1094 = vmul.f32 %v1091, 1.442695
    %v1095 = vpow.pop %v1094
    %v1096 = vadd.f32 %v1093, 1.0
    %v1097 = vadd.f32 %v1095, 1.0
    %v1098 = vrcp.pop %v1096
    %v1099 = vmul.f32 1.0, %v1098
    %v1100 = vrcp.pop %v1097
    %v1101 = vmul.f32 1.0, %v1100
    %v1102 = vadd.f32 %v1083, %v503
    %v1103 = vmul.f32 %v1099, %v1102
    %v1104 = vadd.f32 %v1005, %v1103
    %v1105 = vtanh.pop %v1104
    %v1106 = vsub.f32 %v1002, %v1105
    %v1107 = vmul.f32 %v1101, %v1106
    %v1108 = vadd.f32 %v1105, %v1107
    %v1109 = vld [vmem:[#allocation2 + $0x78] sm:$0xff]
    %v1110 = vld [vmem:[#allocation2 + $0x80] sm:$0xff]
    %v1111 = vld [vmem:[#allocation2 + $0x88] sm:$0xff]
    %v1112 = vpack.c.bf16 %v1108, %v1108
    %1113 = vmatprep.subr.bf16.mxu0 %v642
    %1114 = vmatpush1.bf16.msra.mxu0 %v641
    %1115 = vmatprep.subr.bf16.mxu0 %v645
    %1116 = vmatpush1.bf16.msra.mxu0 %v644
    %1117 = vmatprep.subr.bf16.mxu0 %v648
    %1118 = vmatpush1.bf16.msra.mxu0 %v647
    %1119 = vmatprep.subr.bf16.mxu0 %v651
    %1120 = vmatpush1.bf16.msra.mxu0 %v650
    %1121 = vmatprep.subr.bf16.mxu0 %v654
    %1122 = vmatpush1.bf16.msra.mxu0 %v653
    %1123 = vmatprep.subr.bf16.mxu0 %v657
    %1124 = vmatpush1.bf16.msra.mxu0 %v656
    %1125 = vmatprep.subr.bf16.mxu0 %v660
    %1126 = vmatpush1.bf16.msra.mxu0 %v659
    %1127 = vmatprep.subr.bf16.mxu0 %v663
    %1128 = vmatpush1.bf16.msra.mxu0 %v662
    %1129 = vmatprep.subr.bf16.mxu0 0
    %1130 = vmatpush1.bf16.msra.mxu0 0
    %1131 = vmatprep.subr.bf16.mxu0 0
    %1132 = vmatpush1.bf16.msra.mxu0 0
    %1133 = vmatprep.subr.bf16.mxu0 0
    %1134 = vmatpush1.bf16.msra.mxu0 0
    %1135 = vmatprep.subr.bf16.mxu0 0
    %1136 = vmatpush1.bf16.msra.mxu0 0
    %1137 = vmatprep.subr.bf16.mxu0 0
    %1138 = vmatpush1.bf16.msra.mxu0 0
    %1139 = vmatprep.subr.bf16.mxu0 0
    %1140 = vmatpush1.bf16.msra.mxu0 0
    %1141 = vmatprep.subr.bf16.mxu0 0
    %1142 = vmatpush1.bf16.msra.mxu0 0
    %1143 = vmatprep.subr.bf16.mxu0 0
    %1144 = vmatpush1.bf16.msra.mxu0 0
    %1145 = vmatprep.mubr.bf16.mxu0 0
    %1146 = vmatmul.mubr.bf16.gmra.mrb[0].mxu0 %v1112
    %v1147 = vpop.f32.mrb[0].mxu0
    %v1148 = vadd.f32 0.0, %v1147
    %v1149 = vpop.f32.mrb[0].mxu0
    %v1150 = vadd.f32 0.0, %v1149
    %v1151 = vpop.f32.mrb[0].mxu0
    %v1152 = vpop.f32.mrb[0].mxu0
    %1153 = vdwg.mxu0
    %1154 = vmatprep.subr.bf16.mxu0 0
    %1155 = vmatpush1.bf16.msra.mxu0 %v643
    %1156 = vmatprep.subr.bf16.mxu0 0
    %1157 = vmatpush1.bf16.msra.mxu0 %v646
    %1158 = vmatprep.subr.bf16.mxu0 0
    %1159 = vmatpush1.bf16.msra.mxu0 %v649
    %1160 = vmatprep.subr.bf16.mxu0 0
    %1161 = vmatpush1.bf16.msra.mxu0 %v652
    %1162 = vmatprep.subr.bf16.mxu0 0
    %1163 = vmatpush1.bf16.msra.mxu0 %v655
    %1164 = vmatprep.subr.bf16.mxu0 0
    %1165 = vmatpush1.bf16.msra.mxu0 %v658
    %1166 = vmatprep.subr.bf16.mxu0 0
    %1167 = vmatpush1.bf16.msra.mxu0 %v661
    %1168 = vmatprep.subr.bf16.mxu0 0
    %1169 = vmatpush1.bf16.msra.mxu0 %v664
    %1170 = vmatprep.subr.bf16.mxu0 0
    %1171 = vmatpush1.bf16.msra.mxu0 0
    %1172 = vmatprep.subr.bf16.mxu0 0
    %1173 = vmatpush1.bf16.msra.mxu0 0
    %1174 = vmatprep.subr.bf16.mxu0 0
    %1175 = vmatpush1.bf16.msra.mxu0 0
    %1176 = vmatprep.subr.bf16.mxu0 0
    %1177 = vmatpush1.bf16.msra.mxu0 0
    %1178 = vmatprep.subr.bf16.mxu0 0
    %1179 = vmatpush1.bf16.msra.mxu0 0
    %1180 = vmatprep.subr.bf16.mxu0 0
    %1181 = vmatpush1.bf16.msra.mxu0 0
    %1182 = vmatprep.subr.bf16.mxu0 0
    %1183 = vmatpush1.bf16.msra.mxu0 0
    %1184 = vmatprep.subr.bf16.mxu0 0
    %1185 = vmatpush1.bf16.msra.mxu0 0
    %1186 = vmatprep.mubr.bf16.mxu0 0
    %1187 = vmatmul.mubr.bf16.gmra.mrb[0].mxu0 %v1112
    %v1188 = vpop.f32.mrb[0].mxu0
    %v1189 = vadd.f32 0.0, %v1188
    %v1190 = vpop.f32.mrb[0].mxu0
    %v1191 = vpop.f32.mrb[0].mxu0
    %v1192 = vpop.f32.mrb[0].mxu0
    %1193 = vdwg.mxu0
    %v1194 = vadd.f32 %v1109, %v1148
    %v1195 = vadd.f32 %v1110, %v1150
    %v1196 = vxor.u32 %v1194, 2147483648
    %v1197 = vxor.u32 %v1195, 2147483648
    %v1198 = vmul.f32 %v1196, 1.442695
    %v1199 = vpow.pop %v1198
    %v1200 = vmul.f32 %v1197, 1.442695
    %v1201 = vpow.pop %v1200
    %v1202 = vadd.f32 %v1199, 1.0
    %v1203 = vadd.f32 %v1201, 1.0
    %v1204 = vrcp.pop %v1202
    %v1205 = vmul.f32 1.0, %v1204
    %v1206 = vrcp.pop %v1203
    %v1207 = vmul.f32 1.0, %v1206
    %v1208 = vadd.f32 %v1189, %v503
    %v1209 = vmul.f32 %v1205, %v1208
    %v1210 = vadd.f32 %v1111, %v1209
    %v1211 = vtanh.pop %v1210
    %v1212 = vsub.f32 %v1108, %v1211
    %v1213 = vmul.f32 %v1207, %v1212
    %v1214 = vadd.f32 %v1211, %v1213
    %v1215 = vld [vmem:[#allocation2 + $0x90] sm:$0xff]
    %v1216 = vld [vmem:[#allocation2 + $0x98] sm:$0xff]
    %v1217 = vld [vmem:[#allocation2 + $0xa0] sm:$0xff]
    %v1218 = vpack.c.bf16 %v1214, %v1214
    %1219 = vmatprep.subr.bf16.mxu0 %v642
    %1220 = vmatpush1.bf16.msra.mxu0 %v641
    %1221 = vmatprep.subr.bf16.mxu0 %v645
    %1222 = vmatpush1.bf16.msra.mxu0 %v644
    %1223 = vmatprep.subr.bf16.mxu0 %v648
    %1224 = vmatpush1.bf16.msra.mxu0 %v647
    %1225 = vmatprep.subr.bf16.mxu0 %v651
    %1226 = vmatpush1.bf16.msra.mxu0 %v650
    %1227 = vmatprep.subr.bf16.mxu0 %v654
    %1228 = vmatpush1.bf16.msra.mxu0 %v653
    %1229 = vmatprep.subr.bf16.mxu0 %v657
    %1230 = vmatpush1.bf16.msra.mxu0 %v656
    %1231 = vmatprep.subr.bf16.mxu0 %v660
    %1232 = vmatpush1.bf16.msra.mxu0 %v659
    %1233 = vmatprep.subr.bf16.mxu0 %v663
    %1234 = vmatpush1.bf16.msra.mxu0 %v662
    %1235 = vmatprep.subr.bf16.mxu0 0
    %1236 = vmatpush1.bf16.msra.mxu0 0
    %1237 = vmatprep.subr.bf16.mxu0 0
    %1238 = vmatpush1.bf16.msra.mxu0 0
    %1239 = vmatprep.subr.bf16.mxu0 0
    %1240 = vmatpush1.bf16.msra.mxu0 0
    %1241 = vmatprep.subr.bf16.mxu0 0
    %1242 = vmatpush1.bf16.msra.mxu0 0
    %1243 = vmatprep.subr.bf16.mxu0 0
    %1244 = vmatpush1.bf16.msra.mxu0 0
    %1245 = vmatprep.subr.bf16.mxu0 0
    %1246 = vmatpush1.bf16.msra.mxu0 0
    %1247 = vmatprep.subr.bf16.mxu0 0
    %1248 = vmatpush1.bf16.msra.mxu0 0
    %1249 = vmatprep.subr.bf16.mxu0 0
    %1250 = vmatpush1.bf16.msra.mxu0 0
    %1251 = vmatprep.mubr.bf16.mxu0 0
    %1252 = vmatmul.mubr.bf16.gmra.mrb[0].mxu0 %v1218
    %v1253 = vpop.f32.mrb[0].mxu0
    %v1254 = vadd.f32 0.0, %v1253
    %v1255 = vpop.f32.mrb[0].mxu0
    %v1256 = vadd.f32 0.0, %v1255
    %v1257 = vpop.f32.mrb[0].mxu0
    %v1258 = vpop.f32.mrb[0].mxu0
    %1259 = vdwg.mxu0
    %1260 = vmatprep.subr.bf16.mxu0 0
    %1261 = vmatpush1.bf16.msra.mxu0 %v643
    %1262 = vmatprep.subr.bf16.mxu0 0
    %1263 = vmatpush1.bf16.msra.mxu0 %v646
    %1264 = vmatprep.subr.bf16.mxu0 0
    %1265 = vmatpush1.bf16.msra.mxu0 %v649
    %1266 = vmatprep.subr.bf16.mxu0 0
    %1267 = vmatpush1.bf16.msra.mxu0 %v652
    %1268 = vmatprep.subr.bf16.mxu0 0
    %1269 = vmatpush1.bf16.msra.mxu0 %v655
    %1270 = vmatprep.subr.bf16.mxu0 0
    %1271 = vmatpush1.bf16.msra.mxu0 %v658
    %1272 = vmatprep.subr.bf16.mxu0 0
    %1273 = vmatpush1.bf16.msra.mxu0 %v661
    %1274 = vmatprep.subr.bf16.mxu0 0
    %1275 = vmatpush1.bf16.msra.mxu0 %v664
    %1276 = vmatprep.subr.bf16.mxu0 0
    %1277 = vmatpush1.bf16.msra.mxu0 0
    %1278 = vmatprep.subr.bf16.mxu0 0
    %1279 = vmatpush1.bf16.msra.mxu0 0
    %1280 = vmatprep.subr.bf16.mxu0 0
    %1281 = vmatpush1.bf16.msra.mxu0 0
    %1282 = vmatprep.subr.bf16.mxu0 0
    %1283 = vmatpush1.bf16.msra.mxu0 0
    %1284 = vmatprep.subr.bf16.mxu0 0
    %1285 = vmatpush1.bf16.msra.mxu0 0
    %1286 = vmatprep.subr.bf16.mxu0 0
    %1287 = vmatpush1.bf16.msra.mxu0 0
    %1288 = vmatprep.subr.bf16.mxu0 0
    %1289 = vmatpush1.bf16.msra.mxu0 0
    %1290 = vmatprep.subr.bf16.mxu0 0
    %1291 = vmatpush1.bf16.msra.mxu0 0
    %1292 = vmatprep.mubr.bf16.mxu0 0
    %1293 = vmatmul.mubr.bf16.gmra.mrb[0].mxu0 %v1218
    %v1294 = vpop.f32.mrb[0].mxu0
    %v1295 = vadd.f32 0.0, %v1294
    %v1296 = vpop.f32.mrb[0].mxu0
    %v1297 = vpop.f32.mrb[0].mxu0
    %v1298 = vpop.f32.mrb[0].mxu0
    %1299 = vdwg.mxu0
    %v1300 = vadd.f32 %v1215, %v1254
    %v1301 = vadd.f32 %v1216, %v1256
    %v1302 = vxor.u32 %v1300, 2147483648
    %v1303 = vxor.u32 %v1301, 2147483648
    %v1304 = vmul.f32 %v1302, 1.442695
    %v1305 = vpow.pop %v1304
    %v1306 = vmul.f32 %v1303, 1.442695
    %v1307 = vpow.pop %v1306
    %v1308 = vadd.f32 %v1305, 1.0
    %v1309 = vadd.f32 %v1307, 1.0
    %v1310 = vrcp.pop %v1308
    %v1311 = vmul.f32 1.0, %v1310
    %v1312 = vrcp.pop %v1309
    %v1313 = vmul.f32 1.0, %v1312
    %v1314 = vadd.f32 %v1295, %v503
    %v1315 = vmul.f32 %v1311, %v1314
    %v1316 = vadd.f32 %v1217, %v1315
    %v1317 = vtanh.pop %v1316
    %v1318 = vsub.f32 %v1214, %v1317
    %v1319 = vmul.f32 %v1313, %v1318
    %v1320 = vadd.f32 %v1317, %v1319
    %v1321 = vld [vmem:[#allocation2 + $0xa8] sm:$0xff]
    %v1322 = vld [vmem:[#allocation2 + $0xb0] sm:$0xff]
    %v1323 = vld [vmem:[#allocation2 + $0xb8] sm:$0xff]
    %v1324 = vpack.c.bf16 %v1320, %v1320
    %1325 = vmatprep.subr.bf16.mxu0 %v642
    %1326 = vmatpush1.bf16.msra.mxu0 %v641
    %1327 = vmatprep.subr.bf16.mxu0 %v645
    %1328 = vmatpush1.bf16.msra.mxu0 %v644
    %1329 = vmatprep.subr.bf16.mxu0 %v648
    %1330 = vmatpush1.bf16.msra.mxu0 %v647
    %1331 = vmatprep.subr.bf16.mxu0 %v651
    %1332 = vmatpush1.bf16.msra.mxu0 %v650
    %1333 = vmatprep.subr.bf16.mxu0 %v654
    %1334 = vmatpush1.bf16.msra.mxu0 %v653
    %1335 = vmatprep.subr.bf16.mxu0 %v657
    %1336 = vmatpush1.bf16.msra.mxu0 %v656
    %1337 = vmatprep.subr.bf16.mxu0 %v660
    %1338 = vmatpush1.bf16.msra.mxu0 %v659
    %1339 = vmatprep.subr.bf16.mxu0 %v663
    %1340 = vmatpush1.bf16.msra.mxu0 %v662
    %1341 = vmatprep.subr.bf16.mxu0 0
    %1342 = vmatpush1.bf16.msra.mxu0 0
    %1343 = vmatprep.subr.bf16.mxu0 0
    %1344 = vmatpush1.bf16.msra.mxu0 0
    %1345 = vmatprep.subr.bf16.mxu0 0
    %1346 = vmatpush1.bf16.msra.mxu0 0
    %1347 = vmatprep.subr.bf16.mxu0 0
    %1348 = vmatpush1.bf16.msra.mxu0 0
    %1349 = vmatprep.subr.bf16.mxu0 0
    %1350 = vmatpush1.bf16.msra.mxu0 0
    %1351 = vmatprep.subr.bf16.mxu0 0
    %1352 = vmatpush1.bf16.msra.mxu0 0
    %1353 = vmatprep.subr.bf16.mxu0 0
    %1354 = vmatpush1.bf16.msra.mxu0 0
    %1355 = vmatprep.subr.bf16.mxu0 0
    %1356 = vmatpush1.bf16.msra.mxu0 0
    %1357 = vmatprep.mubr.bf16.mxu0 0
    %1358 = vmatmul.mubr.bf16.gmra.mrb[0].mxu0 %v1324
    %v1359 = vpop.f32.mrb[0].mxu0
    %v1360 = vadd.f32 0.0, %v1359
    %v1361 = vpop.f32.mrb[0].mxu0
    %v1362 = vadd.f32 0.0, %v1361
    %v1363 = vpop.f32.mrb[0].mxu0
    %v1364 = vpop.f32.mrb[0].mxu0
    %1365 = vdwg.mxu0
    %1366 = vmatprep.subr.bf16.mxu0 0
    %1367 = vmatpush1.bf16.msra.mxu0 %v643
    %1368 = vmatprep.subr.bf16.mxu0 0
    %1369 = vmatpush1.bf16.msra.mxu0 %v646
    %1370 = vmatprep.subr.bf16.mxu0 0
    %1371 = vmatpush1.bf16.msra.mxu0 %v649
    %1372 = vmatprep.subr.bf16.mxu0 0
    %1373 = vmatpush1.bf16.msra.mxu0 %v652
    %1374 = vmatprep.subr.bf16.mxu0 0
    %1375 = vmatpush1.bf16.msra.mxu0 %v655
    %1376 = vmatprep.subr.bf16.mxu0 0
    %1377 = vmatpush1.bf16.msra.mxu0 %v658
    %1378 = vmatprep.subr.bf16.mxu0 0
    %1379 = vmatpush1.bf16.msra.mxu0 %v661
    %1380 = vmatprep.subr.bf16.mxu0 0
    %1381 = vmatpush1.bf16.msra.mxu0 %v664
    %1382 = vmatprep.subr.bf16.mxu0 0
    %1383 = vmatpush1.bf16.msra.mxu0 0
    %1384 = vmatprep.subr.bf16.mxu0 0
    %1385 = vmatpush1.bf16.msra.mxu0 0
    %1386 = vmatprep.subr.bf16.mxu0 0
    %1387 = vmatpush1.bf16.msra.mxu0 0
    %1388 = vmatprep.subr.bf16.mxu0 0
    %1389 = vmatpush1.bf16.msra.mxu0 0
    %1390 = vmatprep.subr.bf16.mxu0 0
    %1391 = vmatpush1.bf16.msra.mxu0 0
    %1392 = vmatprep.subr.bf16.mxu0 0
    %1393 = vmatpush1.bf16.msra.mxu0 0
    %1394 = vmatprep.subr.bf16.mxu0 0
    %1395 = vmatpush1.bf16.msra.mxu0 0
    %1396 = vmatprep.subr.bf16.mxu0 0
    %1397 = vmatpush1.bf16.msra.mxu0 0
    %1398 = vmatprep.mubr.bf16.mxu0 0
    %1399 = vmatmul.mubr.bf16.gmra.mrb[0].mxu0 %v1324
    %v1400 = vpop.f32.mrb[0].mxu0
    %v1401 = vadd.f32 0.0, %v1400
    %v1402 = vpop.f32.mrb[0].mxu0
    %v1403 = vpop.f32.mrb[0].mxu0
    %v1404 = vpop.f32.mrb[0].mxu0
    %1405 = vdwg.mxu0
    %v1406 = vadd.f32 %v1321, %v1360
    %v1407 = vadd.f32 %v1322, %v1362
    %v1408 = vxor.u32 %v1406, 2147483648
    %v1409 = vxor.u32 %v1407, 2147483648
    %v1410 = vmul.f32 %v1408, 1.442695
    %v1411 = vpow.pop %v1410
    %v1412 = vmul.f32 %v1409, 1.442695
    %v1413 = vpow.pop %v1412
    %v1414 = vadd.f32 %v1411, 1.0
    %v1415 = vadd.f32 %v1413, 1.0
    %v1416 = vrcp.pop %v1414
    %v1417 = vmul.f32 1.0, %v1416
    %v1418 = vrcp.pop %v1415
    %v1419 = vmul.f32 1.0, %v1418
    %v1420 = vadd.f32 %v1401, %v503
    %v1421 = vmul.f32 %v1417, %v1420
    %v1422 = vadd.f32 %v1323, %v1421
    %v1423 = vtanh.pop %v1422
    %v1424 = vsub.f32 %v1320, %v1423
    %v1425 = vmul.f32 %v1419, %v1424
    %v1426 = vadd.f32 %v1423, %v1425
    %v1427 = vld [vmem:[#allocation5] sm:$0xff]
    %v1428 = vld [vmem:[#allocation5 + $0x8] sm:$0xff]
    %v1429 = vld [vmem:[#allocation5 + $0x10] sm:$0xff]
    %v1430 = vld [vmem:[#allocation5 + $0x18] sm:$0xff]
    %v1431 = vld [vmem:[#allocation5 + $0x20] sm:$0xff]
    %v1432 = vld [vmem:[#allocation5 + $0x28] sm:$0xff]
    %v1433 = vld [vmem:[#allocation5 + $0x30] sm:$0xff]
    %v1434 = vld [vmem:[#allocation5 + $0x38] sm:$0xff]
    %v1435 = vld [vmem:[#allocation5 + $0x40] sm:$0xff]
    %v1436 = vld [vmem:[#allocation5 + $0x48] sm:$0xff]
    %v1437 = vld [vmem:[#allocation5 + $0x50] sm:$0xff]
    %v1438 = vld [vmem:[#allocation5 + $0x58] sm:$0xff]
    %v1439 = vld [vmem:[#allocation5 + $0x60] sm:$0xff]
    %v1440 = vld [vmem:[#allocation5 + $0x68] sm:$0xff]
    %v1441 = vld [vmem:[#allocation5 + $0x70] sm:$0xff]
    %v1442 = vld [vmem:[#allocation5 + $0x78] sm:$0xff]
    %v1443 = vld [vmem:[%s7] sm:$0x1]
    %v1445 = vlaneseq
    %v1446 = vshrl.u32 %v1445, 7
    %v1447 = vsub.s32 0, %v1446
    %v1448 = vrot.slane %v1443, %v1447
    %1450 = vmatprep.subr.mxu0 0.0
    %1451 = vmatpush1.msra.mxu0 %v1427
    %1452 = vmatprep.subr.mxu0 0.0
    %1453 = vmatpush1.msra.mxu0 %v1428
    %1454 = vmatprep.subr.mxu0 0.0
    %1455 = vmatpush1.msra.mxu0 %v1429
    %1456 = vmatprep.subr.mxu0 0.0
    %1457 = vmatpush1.msra.mxu0 %v1430
    %1458 = vmatprep.subr.mxu0 0.0
    %1459 = vmatpush1.msra.mxu0 %v1431
    %1460 = vmatprep.subr.mxu0 0.0
    %1461 = vmatpush1.msra.mxu0 %v1432
    %1462 = vmatprep.subr.mxu0 0.0
    %1463 = vmatpush1.msra.mxu0 %v1433
    %1464 = vmatprep.subr.mxu0 0.0
    %1465 = vmatpush1.msra.mxu0 %v1434
    %1466 = vmatprep.subr.mxu0 0.0
    %1467 = vmatpush1.msra.mxu0 %v1435
    %1468 = vmatprep.subr.mxu0 0.0
    %1469 = vmatpush1.msra.mxu0 %v1436
    %1470 = vmatprep.subr.mxu0 0.0
    %1471 = vmatpush1.msra.mxu0 %v1437
    %1472 = vmatprep.subr.mxu0 0.0
    %1473 = vmatpush1.msra.mxu0 %v1438
    %1474 = vmatprep.subr.mxu0 0.0
    %1475 = vmatpush1.msra.mxu0 %v1439
    %1476 = vmatprep.subr.mxu0 0.0
    %1477 = vmatpush1.msra.mxu0 %v1440
    %1478 = vmatprep.subr.mxu0 0.0
    %1479 = vmatpush1.msra.mxu0 %v1441
    %1480 = vmatprep.subr.mxu0 0.0
    %1481 = vmatpush1.msra.mxu0 %v1442
    %1482 = vmatprep.subr.mxu0 0.0
    %1483 = vmatpush1.msra.mxu0 0.0
    %1484 = vmatprep.subr.mxu0 0.0
    %1485 = vmatpush1.msra.mxu0 0.0
    %1486 = vmatprep.subr.mxu0 0.0
    %1487 = vmatpush1.msra.mxu0 0.0
    %1488 = vmatprep.subr.mxu0 0.0
    %1489 = vmatpush1.msra.mxu0 0.0
    %1490 = vmatprep.subr.mxu0 0.0
    %1491 = vmatpush1.msra.mxu0 0.0
    %1492 = vmatprep.subr.mxu0 0.0
    %1493 = vmatpush1.msra.mxu0 0.0
    %1494 = vmatprep.subr.mxu0 0.0
    %1495 = vmatpush1.msra.mxu0 0.0
    %1496 = vmatprep.subr.mxu0 0.0
    %1497 = vmatpush1.msra.mxu0 0.0
    %1498 = vmatprep.subr.mxu0 0.0
    %1499 = vmatpush1.msra.mxu0 0.0
    %1500 = vmatprep.subr.mxu0 0.0
    %1501 = vmatpush1.msra.mxu0 0.0
    %1502 = vmatprep.subr.mxu0 0.0
    %1503 = vmatpush1.msra.mxu0 0.0
    %1504 = vmatprep.subr.mxu0 0.0
    %1505 = vmatpush1.msra.mxu0 0.0
    %1506 = vmatprep.subr.mxu0 0.0
    %1507 = vmatpush1.msra.mxu0 0.0
    %1508 = vmatprep.subr.mxu0 0.0
    %1509 = vmatpush1.msra.mxu0 0.0
    %1510 = vmatprep.subr.mxu0 0.0
    %1511 = vmatpush1.msra.mxu0 0.0
    %1512 = vmatprep.subr.mxu0 0.0
    %1513 = vmatpush1.msra.mxu0 0.0
    %1514 = vmatprep.mubr.f32.mxu0 0.0
    %1515 = vmatmul.mubr.f32.gmra.mrb[0].mxu0 %v1426
    %v1516 = vpop.f32.mrb[0].mxu0
    %v1517 = vadd.f32 %v1448, %v1516
    %v1518 = vpop.f32.mrb[0].mxu0
    %1519 = vdwg.mxu0
    %1520 = vst [vmem:[%s8] sm:$0xff] %v1517
    // Predicated region
    $region42: #{gru_model_forward.1} parent=1 // pred_check
      _
    $region43: #{gru_model_forward.1} parent=1 // pred_check_branch
      %1522 = sbr.rel (0) target = $region45
    $region44: #{gru_model_forward.1} parent=1 // pred_region
      _
    $region45: #{gru_model_forward.1} parent=1 // pred_fallthru
      _
    // Predicated region
    $region46: #{gru_model_forward.1} parent=1 // pred_check
      _
    $region47: #{gru_model_forward.1} parent=1 // pred_check_branch
      %1524 = sbr.rel (0) target = $region49
    $region48: #{gru_model_forward.1} parent=1 // pred_region
      _
    $region49: #{gru_model_forward.1} parent=1 // pred_fallthru
      _
    %1525 = vsyncpa [#allocation4], 1
    %1526 = vsyncpa [#allocation6], 1

</llo_original>
